<compile_context>
chip_gen: v5e
topology: v5e:2x2
jax: 0.10.0
libtpu: 0.0.40
codegen_flags: <defaults>
</compile_context>

<pallas_src>
import functools

import jax
import jax.numpy as jnp
from jax.experimental import pallas as pl
from jax.experimental.pallas import tpu as pltpu


def _spm_fused_kernel(rgb_ref, freq_ref, w_ref, b_ref, vr_ref, vf_ref,
                      out_ref, xext_ref, col_ref, att_ref, att2d_ref,
                      mflat_ref, *, H, W, C):
    # rgb_ref, freq_ref : (C, H*W)      lane-dense activations (one batch elem)
    # w_ref             : (4, 9*2C)     conv weights, column = (ky*3+kx)*2C + ci
    # b_ref             : (4, 1)        conv bias
    # vr_ref, vf_ref    : (C, 1)        per-channel scales
    # out_ref           : (C, H*W)      lane-dense output
    # scratch:
    #   xext_ref  : (2C, H*(W+2) + 2*(W+3))  zero-padded flat slab
    #   col_ref   : (9*2C, H*(W+2))          flat im2col
    #   att_ref   : (4, H*(W+2))             conv result (padded-flat columns)
    #   att2d_ref : (4, H, W)                attention maps, spatial form
    #   mflat_ref : (2, H*W)                 sigmoid maps, flat form
    HW = H * W
    Cin = 2 * C
    Wp = W + 2            # row pitch of the padded flat slab
    G = H * Wp            # padded-flat spatial extent
    P = Wp + 1            # margin absorbing the largest |tap shift|

    # --- 1) zero-padded flat slab [rgb ; freq] built in VMEM -----------------
    xext_ref[...] = jnp.zeros_like(xext_ref)
    for y in range(H):
        dst = P + y * Wp + 1
        xext_ref[0:C, dst:dst + W] = rgb_ref[:, y * W:(y + 1) * W]
        xext_ref[C:Cin, dst:dst + W] = freq_ref[:, y * W:(y + 1) * W]

    # --- 2) flat im2col: 9 shifted views of the slab (zero taps come from the
    #        explicit gap columns / margins, so no masking is needed) ---------
    for ky in range(3):
        for kx in range(3):
            k = ky * 3 + kx
            s = (ky - 1) * Wp + (kx - 1)
            col_ref[k * Cin:(k + 1) * Cin, :] = xext_ref[:, P + s:P + s + G]

    # --- 3) all four attention maps in one MXU matmul + bias ------------------
    att_ref[...] = jnp.dot(w_ref[...], col_ref[...],
                           preferred_element_type=jnp.float32) + b_ref[...]

    # --- 4) un-flatten the 4 maps to (H, W) (row copies; no lane reshape) -----
    for y in range(H):
        src = y * Wp + 1
        att2d_ref[:, y, :] = att_ref[:, src:src + W]

    a0 = att2d_ref[0]
    a1 = att2d_ref[1]
    a2 = att2d_ref[2]
    a3 = att2d_ref[3]
    m1 = jax.nn.sigmoid(jnp.dot(a0, a1, preferred_element_type=jnp.float32))
    m2 = jax.nn.sigmoid(jnp.dot(a2, a3, preferred_element_type=jnp.float32))

    # --- 5) re-flatten m1/m2 so the final combine & store are lane-dense ------
    for y in range(H):
        mflat_ref[0:1, y * W:(y + 1) * W] = m1[y:y + 1, :]
        mflat_ref[1:2, y * W:(y + 1) * W] = m2[y:y + 1, :]

    # --- 6) fused combine: one full-width (C, H*W) store ----------------------
    out_ref[...] = (mflat_ref[0:1, :] * rgb_ref[...] * vr_ref[...]
                    + mflat_ref[1:2, :] * freq_ref[...] * vf_ref[...])


def spm_forward(rgb, freq, conv_w, conv_b, v_rgb, v_freq):
    """rgb, freq: (B, C, H, W) f32; conv_w OIHW (4, 2C, 3, 3). Returns (B, C, H, W)."""
    B, C, H, W = rgb.shape
    assert freq.shape == rgb.shape
    assert H == W, "torch.matmul over spatial dims requires square feature maps"
    assert B == 1, "PyTorch's (B,H,W)*(B,C,H,W) broadcast only defined for B==1"
    HW = H * W
    Cin = 2 * C
    K9 = 9 * Cin
    Wp = W + 2
    G = H * Wp
    P = Wp + 1

    # Free, contiguous reshapes only (no pad / transpose / concat passes).
    rgb_flat = rgb.reshape(B, C, HW)
    freq_flat = freq.reshape(B, C, HW)
    # OIHW -> (O, ky, kx, ci) -> (4, 9*2C); column index = (ky*3+kx)*2C + ci.
    w_mat = jnp.transpose(conv_w, (0, 2, 3, 1)).reshape(4, K9)
    b_col = conv_b.reshape(4, 1)
    vr = v_rgb.reshape(C, 1)
    vf = v_freq.reshape(C, 1)

    kernel = functools.partial(_spm_fused_kernel, H=H, W=W, C=C)
    out_flat = pl.pallas_call(
        kernel,
        out_shape=jax.ShapeDtypeStruct((B, C, HW), jnp.float32),
        grid=(B,),
        in_specs=[
            pl.BlockSpec((None, C, HW), lambda b: (b, 0, 0)),
            pl.BlockSpec((None, C, HW), lambda b: (b, 0, 0)),
            pl.BlockSpec((4, K9), lambda b: (0, 0)),
            pl.BlockSpec((4, 1), lambda b: (0, 0)),
            pl.BlockSpec((C, 1), lambda b: (0, 0)),
            pl.BlockSpec((C, 1), lambda b: (0, 0)),
        ],
        out_specs=pl.BlockSpec((None, C, HW), lambda b: (b, 0, 0)),
        scratch_shapes=[
            pltpu.VMEM((Cin, G + 2 * P), jnp.float32),   # padded flat slab
            pltpu.VMEM((K9, G), jnp.float32),            # flat im2col
            pltpu.VMEM((4, G), jnp.float32),             # conv output
            pltpu.VMEM((4, H, W), jnp.float32),          # attention maps (2D)
            pltpu.VMEM((2, HW), jnp.float32),            # sigmoid maps (flat)
        ],
        compiler_params=pltpu.CompilerParams(
            dimension_semantics=("parallel",)),
    )(rgb_flat, freq_flat, w_mat, b_col, vr, vf)
    # TODO(synk): the rest of Main_Net (res2net backbone, BN, bilinear
    # interpolate, decoders) is ordinary XLA-level plumbing and is out of scope
    # for this SPM kernel.
    return out_flat.reshape(B, C, H, W)


def spm_reference(rgb, freq, conv_w, conv_b, v_rgb, v_freq):
    """Pure-JAX reference mirroring the PyTorch SPM.forward (B == 1)."""
    x = jnp.concatenate([rgb, freq], axis=1)
    att = jax.lax.conv_general_dilated(
        x, conv_w, window_strides=(1, 1), padding=((1, 1), (1, 1)),
        dimension_numbers=("NCHW", "OIHW", "NCHW")) + conv_b.reshape(1, 4, 1, 1)
    m1 = jax.nn.sigmoid(jnp.matmul(att[:, 0], att[:, 1]))
    m2 = jax.nn.sigmoid(jnp.matmul(att[:, 2], att[:, 3]))
    return m1[:, None] * rgb * v_rgb + m2[:, None] * freq * v_freq


if __name__ == "__main__":
    key = jax.random.PRNGKey(0)
    B, C, H, W = 1, 8, 16, 16   # SPM(in_dim=C); B must be 1 (torch broadcast)
    k1, k2, k3, k4, k5, k6 = jax.random.split(key, 6)

    rgb = jax.random.normal(k1, (B, C, H, W), jnp.float32)
    freq = jax.random.normal(k2, (B, C, H, W), jnp.float32)
    conv_w = 0.1 * jax.random.normal(k3, (4, 2 * C, 3, 3), jnp.float32)  # OIHW
    conv_b = 0.1 * jax.random.normal(k4, (4,), jnp.float32)
    v_rgb = jax.random.normal(k5, (1, C, 1, 1), jnp.float32)
    v_freq = jax.random.normal(k6, (1, C, 1, 1), jnp.float32)

    out = jax.jit(spm_forward)(rgb, freq, conv_w, conv_b, v_rgb, v_freq)
    out = jax.block_until_ready(out)

    ref = spm_reference(rgb, freq, conv_w, conv_b, v_rgb, v_freq)
    assert out.shape == (B, C, H, W)
    assert jnp.allclose(out, ref, rtol=3e-3, atol=3e-3), "mismatch vs reference"
    print("KERNEL_OK")
</pallas_src>

<mosaic_0001>
module attributes {stable_mosaic.version = 11 : i64} {
  func.func @_spm_fused_kernel(%arg0: i32, %arg1: memref<1x8x256xf32, #tpu.memory_space<vmem>>, %arg2: memref<1x8x256xf32, #tpu.memory_space<vmem>>, %arg3: memref<4x144xf32, #tpu.memory_space<vmem>>, %arg4: memref<4x1xf32, #tpu.memory_space<vmem>>, %arg5: memref<8x1xf32, #tpu.memory_space<vmem>>, %arg6: memref<8x1xf32, #tpu.memory_space<vmem>>, %arg7: memref<1x8x256xf32, #tpu.memory_space<vmem>>, %arg8: memref<16x326xf32, #tpu.memory_space<vmem>>, %arg9: memref<144x288xf32, #tpu.memory_space<vmem>>, %arg10: memref<4x288xf32, #tpu.memory_space<vmem>>, %arg11: memref<4x16x16xf32, #tpu.memory_space<vmem>>, %arg12: memref<2x256xf32, #tpu.memory_space<vmem>>) attributes {dimension_semantics = [#tpu.dimension_semantics<parallel>], iteration_bounds = array<i64: 1>, scalar_prefetch = 0 : i64, scratch_operands = 5 : i64, tpu.core_type = #tpu.core_type<tc>, window_params = [{transform_indices = @transform_0, window_bounds = array<i64: 1, 8, 256>}, {transform_indices = @transform_1, window_bounds = array<i64: 1, 8, 256>}, {pipeline_mode = #tpu.pipeline_mode<synchronous>, transform_indices = @transform_2, window_bounds = array<i64: 4, 144>}, {pipeline_mode = #tpu.pipeline_mode<synchronous>, transform_indices = @transform_3, window_bounds = array<i64: 4, 1>}, {pipeline_mode = #tpu.pipeline_mode<synchronous>, transform_indices = @transform_4, window_bounds = array<i64: 8, 1>}, {pipeline_mode = #tpu.pipeline_mode<synchronous>, transform_indices = @transform_5, window_bounds = array<i64: 8, 1>}, {transform_indices = @transform_6, window_bounds = array<i64: 1, 8, 256>}]} {
    %cst = arith.constant 0.000000e+00 : f32
    %0 = vector.broadcast %cst : f32 to vector<16x326xf32>
    %c0 = arith.constant 0 : index
    %c0_0 = arith.constant 0 : index
    %1 = vector.load %arg8[%c0, %c0_0] : memref<16x326xf32, #tpu.memory_space<vmem>>, vector<16x326xf32>
    tpu.vector_store %arg8[%c0, %c0_0], %0 {strides = array<i32>} : memref<16x326xf32, #tpu.memory_space<vmem>>, vector<16x326xf32>,
    %c0_1 = arith.constant 0 : index
    %c0_2 = arith.constant 0 : index
    %c0_3 = arith.constant 0 : index
    %2 = vector.load %arg1[%c0_1, %c0_2, %c0_3] : memref<1x8x256xf32, #tpu.memory_space<vmem>>, vector<1x8x16xf32>
    %3 = vector.shape_cast %2 : vector<1x8x16xf32> to vector<8x16xf32>
    %c0_4 = arith.constant 0 : index
    %c20 = arith.constant 20 : index
    %4 = vector.load %arg8[%c0_4, %c20] : memref<16x326xf32, #tpu.memory_space<vmem>>, vector<8x16xf32>
    tpu.vector_store %arg8[%c0_4, %c20], %3 {strides = array<i32>} : memref<16x326xf32, #tpu.memory_space<vmem>>, vector<8x16xf32>,
    %c0_5 = arith.constant 0 : index
    %c0_6 = arith.constant 0 : index
    %c0_7 = arith.constant 0 : index
    %5 = vector.load %arg2[%c0_5, %c0_6, %c0_7] : memref<1x8x256xf32, #tpu.memory_space<vmem>>, vector<1x8x16xf32>
    %6 = vector.shape_cast %5 : vector<1x8x16xf32> to vector<8x16xf32>
    %c8 = arith.constant 8 : index
    %c20_8 = arith.constant 20 : index
    %7 = vector.load %arg8[%c8, %c20_8] : memref<16x326xf32, #tpu.memory_space<vmem>>, vector<8x16xf32>
    tpu.vector_store %arg8[%c8, %c20_8], %6 {strides = array<i32>} : memref<16x326xf32, #tpu.memory_space<vmem>>, vector<8x16xf32>,
    %c0_9 = arith.constant 0 : index
    %c0_10 = arith.constant 0 : index
    %c16 = arith.constant 16 : index
    %8 = vector.load %arg1[%c0_9, %c0_10, %c16] : memref<1x8x256xf32, #tpu.memory_space<vmem>>, vector<1x8x16xf32>
    %9 = vector.shape_cast %8 : vector<1x8x16xf32> to vector<8x16xf32>
    %c0_11 = arith.constant 0 : index
    %c38 = arith.constant 38 : index
    %10 = vector.load %arg8[%c0_11, %c38] : memref<16x326xf32, #tpu.memory_space<vmem>>, vector<8x16xf32>
    tpu.vector_store %arg8[%c0_11, %c38], %9 {strides = array<i32>} : memref<16x326xf32, #tpu.memory_space<vmem>>, vector<8x16xf32>,
    %c0_12 = arith.constant 0 : index
    %c0_13 = arith.constant 0 : index
    %c16_14 = arith.constant 16 : index
    %11 = vector.load %arg2[%c0_12, %c0_13, %c16_14] : memref<1x8x256xf32, #tpu.memory_space<vmem>>, vector<1x8x16xf32>
    %12 = vector.shape_cast %11 : vector<1x8x16xf32> to vector<8x16xf32>
    %c8_15 = arith.constant 8 : index
    %c38_16 = arith.constant 38 : index
    %13 = vector.load %arg8[%c8_15, %c38_16] : memref<16x326xf32, #tpu.memory_space<vmem>>, vector<8x16xf32>
    tpu.vector_store %arg8[%c8_15, %c38_16], %12 {strides = array<i32>} : memref<16x326xf32, #tpu.memory_space<vmem>>, vector<8x16xf32>,
    %c0_17 = arith.constant 0 : index
    %c0_18 = arith.constant 0 : index
    %c32 = arith.constant 32 : index
    %14 = vector.load %arg1[%c0_17, %c0_18, %c32] : memref<1x8x256xf32, #tpu.memory_space<vmem>>, vector<1x8x16xf32>
    %15 = vector.shape_cast %14 : vector<1x8x16xf32> to vector<8x16xf32>
    %c0_19 = arith.constant 0 : index
    %c56 = arith.constant 56 : index
    %16 = vector.load %arg8[%c0_19, %c56] : memref<16x326xf32, #tpu.memory_space<vmem>>, vector<8x16xf32>
    tpu.vector_store %arg8[%c0_19, %c56], %15 {strides = array<i32>} : memref<16x326xf32, #tpu.memory_space<vmem>>, vector<8x16xf32>,
    %c0_20 = arith.constant 0 : index
    %c0_21 = arith.constant 0 : index
    %c32_22 = arith.constant 32 : index
    %17 = vector.load %arg2[%c0_20, %c0_21, %c32_22] : memref<1x8x256xf32, #tpu.memory_space<vmem>>, vector<1x8x16xf32>
    %18 = vector.shape_cast %17 : vector<1x8x16xf32> to vector<8x16xf32>
    %c8_23 = arith.constant 8 : index
    %c56_24 = arith.constant 56 : index
    %19 = vector.load %arg8[%c8_23, %c56_24] : memref<16x326xf32, #tpu.memory_space<vmem>>, vector<8x16xf32>
    tpu.vector_store %arg8[%c8_23, %c56_24], %18 {strides = array<i32>} : memref<16x326xf32, #tpu.memory_space<vmem>>, vector<8x16xf32>,
    %c0_25 = arith.constant 0 : index
    %c0_26 = arith.constant 0 : index
    %c48 = arith.constant 48 : index
    %20 = vector.load %arg1[%c0_25, %c0_26, %c48] : memref<1x8x256xf32, #tpu.memory_space<vmem>>, vector<1x8x16xf32>
    %21 = vector.shape_cast %20 : vector<1x8x16xf32> to vector<8x16xf32>
    %c0_27 = arith.constant 0 : index
    %c74 = arith.constant 74 : index
    %22 = vector.load %arg8[%c0_27, %c74] : memref<16x326xf32, #tpu.memory_space<vmem>>, vector<8x16xf32>
    tpu.vector_store %arg8[%c0_27, %c74], %21 {strides = array<i32>} : memref<16x326xf32, #tpu.memory_space<vmem>>, vector<8x16xf32>,
    %c0_28 = arith.constant 0 : index
    %c0_29 = arith.constant 0 : index
    %c48_30 = arith.constant 48 : index
    %23 = vector.load %arg2[%c0_28, %c0_29, %c48_30] : memref<1x8x256xf32, #tpu.memory_space<vmem>>, vector<1x8x16xf32>
    %24 = vector.shape_cast %23 : vector<1x8x16xf32> to vector<8x16xf32>
    %c8_31 = arith.constant 8 : index
    %c74_32 = arith.constant 74 : index
    %25 = vector.load %arg8[%c8_31, %c74_32] : memref<16x326xf32, #tpu.memory_space<vmem>>, vector<8x16xf32>
    tpu.vector_store %arg8[%c8_31, %c74_32], %24 {strides = array<i32>} : memref<16x326xf32, #tpu.memory_space<vmem>>, vector<8x16xf32>,
    %c0_33 = arith.constant 0 : index
    %c0_34 = arith.constant 0 : index
    %c64 = arith.constant 64 : index
    %26 = vector.load %arg1[%c0_33, %c0_34, %c64] : memref<1x8x256xf32, #tpu.memory_space<vmem>>, vector<1x8x16xf32>
    %27 = vector.shape_cast %26 : vector<1x8x16xf32> to vector<8x16xf32>
    %c0_35 = arith.constant 0 : index
    %c92 = arith.constant 92 : index
    %28 = vector.load %arg8[%c0_35, %c92] : memref<16x326xf32, #tpu.memory_space<vmem>>, vector<8x16xf32>
    tpu.vector_store %arg8[%c0_35, %c92], %27 {strides = array<i32>} : memref<16x326xf32, #tpu.memory_space<vmem>>, vector<8x16xf32>,
    %c0_36 = arith.constant 0 : index
    %c0_37 = arith.constant 0 : index
    %c64_38 = arith.constant 64 : index
    %29 = vector.load %arg2[%c0_36, %c0_37, %c64_38] : memref<1x8x256xf32, #tpu.memory_space<vmem>>, vector<1x8x16xf32>
    %30 = vector.shape_cast %29 : vector<1x8x16xf32> to vector<8x16xf32>
    %c8_39 = arith.constant 8 : index
    %c92_40 = arith.constant 92 : index
    %31 = vector.load %arg8[%c8_39, %c92_40] : memref<16x326xf32, #tpu.memory_space<vmem>>, vector<8x16xf32>
    tpu.vector_store %arg8[%c8_39, %c92_40], %30 {strides = array<i32>} : memref<16x326xf32, #tpu.memory_space<vmem>>, vector<8x16xf32>,
    %c0_41 = arith.constant 0 : index
    %c0_42 = arith.constant 0 : index
    %c80 = arith.constant 80 : index
    %32 = vector.load %arg1[%c0_41, %c0_42, %c80] : memref<1x8x256xf32, #tpu.memory_space<vmem>>, vector<1x8x16xf32>
    %33 = vector.shape_cast %32 : vector<1x8x16xf32> to vector<8x16xf32>
    %c0_43 = arith.constant 0 : index
    %c110 = arith.constant 110 : index
    %34 = vector.load %arg8[%c0_43, %c110] : memref<16x326xf32, #tpu.memory_space<vmem>>, vector<8x16xf32>
    tpu.vector_store %arg8[%c0_43, %c110], %33 {strides = array<i32>} : memref<16x326xf32, #tpu.memory_space<vmem>>, vector<8x16xf32>,
    %c0_44 = arith.constant 0 : index
    %c0_45 = arith.constant 0 : index
    %c80_46 = arith.constant 80 : index
    %35 = vector.load %arg2[%c0_44, %c0_45, %c80_46] : memref<1x8x256xf32, #tpu.memory_space<vmem>>, vector<1x8x16xf32>
    %36 = vector.shape_cast %35 : vector<1x8x16xf32> to vector<8x16xf32>
    %c8_47 = arith.constant 8 : index
    %c110_48 = arith.constant 110 : index
    %37 = vector.load %arg8[%c8_47, %c110_48] : memref<16x326xf32, #tpu.memory_space<vmem>>, vector<8x16xf32>
    tpu.vector_store %arg8[%c8_47, %c110_48], %36 {strides = array<i32>} : memref<16x326xf32, #tpu.memory_space<vmem>>, vector<8x16xf32>,
    %c0_49 = arith.constant 0 : index
    %c0_50 = arith.constant 0 : index
    %c96 = arith.constant 96 : index
    %38 = vector.load %arg1[%c0_49, %c0_50, %c96] : memref<1x8x256xf32, #tpu.memory_space<vmem>>, vector<1x8x16xf32>
    %39 = vector.shape_cast %38 : vector<1x8x16xf32> to vector<8x16xf32>
    %c0_51 = arith.constant 0 : index
    %c128 = arith.constant 128 : index
    %40 = vector.load %arg8[%c0_51, %c128] : memref<16x326xf32, #tpu.memory_space<vmem>>, vector<8x16xf32>
    tpu.vector_store %arg8[%c0_51, %c128], %39 {strides = array<i32>} : memref<16x326xf32, #tpu.memory_space<vmem>>, vector<8x16xf32>,
    %c0_52 = arith.constant 0 : index
    %c0_53 = arith.constant 0 : index
    %c96_54 = arith.constant 96 : index
    %41 = vector.load %arg2[%c0_52, %c0_53, %c96_54] : memref<1x8x256xf32, #tpu.memory_space<vmem>>, vector<1x8x16xf32>
    %42 = vector.shape_cast %41 : vector<1x8x16xf32> to vector<8x16xf32>
    %c8_55 = arith.constant 8 : index
    %c128_56 = arith.constant 128 : index
    %43 = vector.load %arg8[%c8_55, %c128_56] : memref<16x326xf32, #tpu.memory_space<vmem>>, vector<8x16xf32>
    tpu.vector_store %arg8[%c8_55, %c128_56], %42 {strides = array<i32>} : memref<16x326xf32, #tpu.memory_space<vmem>>, vector<8x16xf32>,
    %c0_57 = arith.constant 0 : index
    %c0_58 = arith.constant 0 : index
    %c112 = arith.constant 112 : index
    %44 = vector.load %arg1[%c0_57, %c0_58, %c112] : memref<1x8x256xf32, #tpu.memory_space<vmem>>, vector<1x8x16xf32>
    %45 = vector.shape_cast %44 : vector<1x8x16xf32> to vector<8x16xf32>
    %c0_59 = arith.constant 0 : index
    %c146 = arith.constant 146 : index
    %46 = vector.load %arg8[%c0_59, %c146] : memref<16x326xf32, #tpu.memory_space<vmem>>, vector<8x16xf32>
    tpu.vector_store %arg8[%c0_59, %c146], %45 {strides = array<i32>} : memref<16x326xf32, #tpu.memory_space<vmem>>, vector<8x16xf32>,
    %c0_60 = arith.constant 0 : index
    %c0_61 = arith.constant 0 : index
    %c112_62 = arith.constant 112 : index
    %47 = vector.load %arg2[%c0_60, %c0_61, %c112_62] : memref<1x8x256xf32, #tpu.memory_space<vmem>>, vector<1x8x16xf32>
    %48 = vector.shape_cast %47 : vector<1x8x16xf32> to vector<8x16xf32>
    %c8_63 = arith.constant 8 : index
    %c146_64 = arith.constant 146 : index
    %49 = vector.load %arg8[%c8_63, %c146_64] : memref<16x326xf32, #tpu.memory_space<vmem>>, vector<8x16xf32>
    tpu.vector_store %arg8[%c8_63, %c146_64], %48 {strides = array<i32>} : memref<16x326xf32, #tpu.memory_space<vmem>>, vector<8x16xf32>,
    %c0_65 = arith.constant 0 : index
    %c0_66 = arith.constant 0 : index
    %c128_67 = arith.constant 128 : index
    %50 = vector.load %arg1[%c0_65, %c0_66, %c128_67] : memref<1x8x256xf32, #tpu.memory_space<vmem>>, vector<1x8x16xf32>
    %51 = vector.shape_cast %50 : vector<1x8x16xf32> to vector<8x16xf32>
    %c0_68 = arith.constant 0 : index
    %c164 = arith.constant 164 : index
    %52 = vector.load %arg8[%c0_68, %c164] : memref<16x326xf32, #tpu.memory_space<vmem>>, vector<8x16xf32>
    tpu.vector_store %arg8[%c0_68, %c164], %51 {strides = array<i32>} : memref<16x326xf32, #tpu.memory_space<vmem>>, vector<8x16xf32>,
    %c0_69 = arith.constant 0 : index
    %c0_70 = arith.constant 0 : index
    %c128_71 = arith.constant 128 : index
    %53 = vector.load %arg2[%c0_69, %c0_70, %c128_71] : memref<1x8x256xf32, #tpu.memory_space<vmem>>, vector<1x8x16xf32>
    %54 = vector.shape_cast %53 : vector<1x8x16xf32> to vector<8x16xf32>
    %c8_72 = arith.constant 8 : index
    %c164_73 = arith.constant 164 : index
    %55 = vector.load %arg8[%c8_72, %c164_73] : memref<16x326xf32, #tpu.memory_space<vmem>>, vector<8x16xf32>
    tpu.vector_store %arg8[%c8_72, %c164_73], %54 {strides = array<i32>} : memref<16x326xf32, #tpu.memory_space<vmem>>, vector<8x16xf32>,
    %c0_74 = arith.constant 0 : index
    %c0_75 = arith.constant 0 : index
    %c144 = arith.constant 144 : index
    %56 = vector.load %arg1[%c0_74, %c0_75, %c144] : memref<1x8x256xf32, #tpu.memory_space<vmem>>, vector<1x8x16xf32>
    %57 = vector.shape_cast %56 : vector<1x8x16xf32> to vector<8x16xf32>
    %c0_76 = arith.constant 0 : index
    %c182 = arith.constant 182 : index
    %58 = vector.load %arg8[%c0_76, %c182] : memref<16x326xf32, #tpu.memory_space<vmem>>, vector<8x16xf32>
    tpu.vector_store %arg8[%c0_76, %c182], %57 {strides = array<i32>} : memref<16x326xf32, #tpu.memory_space<vmem>>, vector<8x16xf32>,
    %c0_77 = arith.constant 0 : index
    %c0_78 = arith.constant 0 : index
    %c144_79 = arith.constant 144 : index
    %59 = vector.load %arg2[%c0_77, %c0_78, %c144_79] : memref<1x8x256xf32, #tpu.memory_space<vmem>>, vector<1x8x16xf32>
    %60 = vector.shape_cast %59 : vector<1x8x16xf32> to vector<8x16xf32>
    %c8_80 = arith.constant 8 : index
    %c182_81 = arith.constant 182 : index
    %61 = vector.load %arg8[%c8_80, %c182_81] : memref<16x326xf32, #tpu.memory_space<vmem>>, vector<8x16xf32>
    tpu.vector_store %arg8[%c8_80, %c182_81], %60 {strides = array<i32>} : memref<16x326xf32, #tpu.memory_space<vmem>>, vector<8x16xf32>,
    %c0_82 = arith.constant 0 : index
    %c0_83 = arith.constant 0 : index
    %c160 = arith.constant 160 : index
    %62 = vector.load %arg1[%c0_82, %c0_83, %c160] : memref<1x8x256xf32, #tpu.memory_space<vmem>>, vector<1x8x16xf32>
    %63 = vector.shape_cast %62 : vector<1x8x16xf32> to vector<8x16xf32>
    %c0_84 = arith.constant 0 : index
    %c200 = arith.constant 200 : index
    %64 = vector.load %arg8[%c0_84, %c200] : memref<16x326xf32, #tpu.memory_space<vmem>>, vector<8x16xf32>
    tpu.vector_store %arg8[%c0_84, %c200], %63 {strides = array<i32>} : memref<16x326xf32, #tpu.memory_space<vmem>>, vector<8x16xf32>,
    %c0_85 = arith.constant 0 : index
    %c0_86 = arith.constant 0 : index
    %c160_87 = arith.constant 160 : index
    %65 = vector.load %arg2[%c0_85, %c0_86, %c160_87] : memref<1x8x256xf32, #tpu.memory_space<vmem>>, vector<1x8x16xf32>
    %66 = vector.shape_cast %65 : vector<1x8x16xf32> to vector<8x16xf32>
    %c8_88 = arith.constant 8 : index
    %c200_89 = arith.constant 200 : index
    %67 = vector.load %arg8[%c8_88, %c200_89] : memref<16x326xf32, #tpu.memory_space<vmem>>, vector<8x16xf32>
    tpu.vector_store %arg8[%c8_88, %c200_89], %66 {strides = array<i32>} : memref<16x326xf32, #tpu.memory_space<vmem>>, vector<8x16xf32>,
    %c0_90 = arith.constant 0 : index
    %c0_91 = arith.constant 0 : index
    %c176 = arith.constant 176 : index
    %68 = vector.load %arg1[%c0_90, %c0_91, %c176] : memref<1x8x256xf32, #tpu.memory_space<vmem>>, vector<1x8x16xf32>
    %69 = vector.shape_cast %68 : vector<1x8x16xf32> to vector<8x16xf32>
    %c0_92 = arith.constant 0 : index
    %c218 = arith.constant 218 : index
    %70 = vector.load %arg8[%c0_92, %c218] : memref<16x326xf32, #tpu.memory_space<vmem>>, vector<8x16xf32>
    tpu.vector_store %arg8[%c0_92, %c218], %69 {strides = array<i32>} : memref<16x326xf32, #tpu.memory_space<vmem>>, vector<8x16xf32>,
    %c0_93 = arith.constant 0 : index
    %c0_94 = arith.constant 0 : index
    %c176_95 = arith.constant 176 : index
    %71 = vector.load %arg2[%c0_93, %c0_94, %c176_95] : memref<1x8x256xf32, #tpu.memory_space<vmem>>, vector<1x8x16xf32>
    %72 = vector.shape_cast %71 : vector<1x8x16xf32> to vector<8x16xf32>
    %c8_96 = arith.constant 8 : index
    %c218_97 = arith.constant 218 : index
    %73 = vector.load %arg8[%c8_96, %c218_97] : memref<16x326xf32, #tpu.memory_space<vmem>>, vector<8x16xf32>
    tpu.vector_store %arg8[%c8_96, %c218_97], %72 {strides = array<i32>} : memref<16x326xf32, #tpu.memory_space<vmem>>, vector<8x16xf32>,
    %c0_98 = arith.constant 0 : index
    %c0_99 = arith.constant 0 : index
    %c192 = arith.constant 192 : index
    %74 = vector.load %arg1[%c0_98, %c0_99, %c192] : memref<1x8x256xf32, #tpu.memory_space<vmem>>, vector<1x8x16xf32>
    %75 = vector.shape_cast %74 : vector<1x8x16xf32> to vector<8x16xf32>
    %c0_100 = arith.constant 0 : index
    %c236 = arith.constant 236 : index
    %76 = vector.load %arg8[%c0_100, %c236] : memref<16x326xf32, #tpu.memory_space<vmem>>, vector<8x16xf32>
    tpu.vector_store %arg8[%c0_100, %c236], %75 {strides = array<i32>} : memref<16x326xf32, #tpu.memory_space<vmem>>, vector<8x16xf32>,
    %c0_101 = arith.constant 0 : index
    %c0_102 = arith.constant 0 : index
    %c192_103 = arith.constant 192 : index
    %77 = vector.load %arg2[%c0_101, %c0_102, %c192_103] : memref<1x8x256xf32, #tpu.memory_space<vmem>>, vector<1x8x16xf32>
    %78 = vector.shape_cast %77 : vector<1x8x16xf32> to vector<8x16xf32>
    %c8_104 = arith.constant 8 : index
    %c236_105 = arith.constant 236 : index
    %79 = vector.load %arg8[%c8_104, %c236_105] : memref<16x326xf32, #tpu.memory_space<vmem>>, vector<8x16xf32>
    tpu.vector_store %arg8[%c8_104, %c236_105], %78 {strides = array<i32>} : memref<16x326xf32, #tpu.memory_space<vmem>>, vector<8x16xf32>,
    %c0_106 = arith.constant 0 : index
    %c0_107 = arith.constant 0 : index
    %c208 = arith.constant 208 : index
    %80 = vector.load %arg1[%c0_106, %c0_107, %c208] : memref<1x8x256xf32, #tpu.memory_space<vmem>>, vector<1x8x16xf32>
    %81 = vector.shape_cast %80 : vector<1x8x16xf32> to vector<8x16xf32>
    %c0_108 = arith.constant 0 : index
    %c254 = arith.constant 254 : index
    %82 = vector.load %arg8[%c0_108, %c254] : memref<16x326xf32, #tpu.memory_space<vmem>>, vector<8x16xf32>
    tpu.vector_store %arg8[%c0_108, %c254], %81 {strides = array<i32>} : memref<16x326xf32, #tpu.memory_space<vmem>>, vector<8x16xf32>,
    %c0_109 = arith.constant 0 : index
    %c0_110 = arith.constant 0 : index
    %c208_111 = arith.constant 208 : index
    %83 = vector.load %arg2[%c0_109, %c0_110, %c208_111] : memref<1x8x256xf32, #tpu.memory_space<vmem>>, vector<1x8x16xf32>
    %84 = vector.shape_cast %83 : vector<1x8x16xf32> to vector<8x16xf32>
    %c8_112 = arith.constant 8 : index
    %c254_113 = arith.constant 254 : index
    %85 = vector.load %arg8[%c8_112, %c254_113] : memref<16x326xf32, #tpu.memory_space<vmem>>, vector<8x16xf32>
    tpu.vector_store %arg8[%c8_112, %c254_113], %84 {strides = array<i32>} : memref<16x326xf32, #tpu.memory_space<vmem>>, vector<8x16xf32>,
    %c0_114 = arith.constant 0 : index
    %c0_115 = arith.constant 0 : index
    %c224 = arith.constant 224 : index
    %86 = vector.load %arg1[%c0_114, %c0_115, %c224] : memref<1x8x256xf32, #tpu.memory_space<vmem>>, vector<1x8x16xf32>
    %87 = vector.shape_cast %86 : vector<1x8x16xf32> to vector<8x16xf32>
    %c0_116 = arith.constant 0 : index
    %c272 = arith.constant 272 : index
    %88 = vector.load %arg8[%c0_116, %c272] : memref<16x326xf32, #tpu.memory_space<vmem>>, vector<8x16xf32>
    tpu.vector_store %arg8[%c0_116, %c272], %87 {strides = array<i32>} : memref<16x326xf32, #tpu.memory_space<vmem>>, vector<8x16xf32>,
    %c0_117 = arith.constant 0 : index
    %c0_118 = arith.constant 0 : index
    %c224_119 = arith.constant 224 : index
    %89 = vector.load %arg2[%c0_117, %c0_118, %c224_119] : memref<1x8x256xf32, #tpu.memory_space<vmem>>, vector<1x8x16xf32>
    %90 = vector.shape_cast %89 : vector<1x8x16xf32> to vector<8x16xf32>
    %c8_120 = arith.constant 8 : index
    %c272_121 = arith.constant 272 : index
    %91 = vector.load %arg8[%c8_120, %c272_121] : memref<16x326xf32, #tpu.memory_space<vmem>>, vector<8x16xf32>
    tpu.vector_store %arg8[%c8_120, %c272_121], %90 {strides = array<i32>} : memref<16x326xf32, #tpu.memory_space<vmem>>, vector<8x16xf32>,
    %c0_122 = arith.constant 0 : index
    %c0_123 = arith.constant 0 : index
    %c240 = arith.constant 240 : index
    %92 = vector.load %arg1[%c0_122, %c0_123, %c240] : memref<1x8x256xf32, #tpu.memory_space<vmem>>, vector<1x8x16xf32>
    %93 = vector.shape_cast %92 : vector<1x8x16xf32> to vector<8x16xf32>
    %c0_124 = arith.constant 0 : index
    %c290 = arith.constant 290 : index
    %94 = vector.load %arg8[%c0_124, %c290] : memref<16x326xf32, #tpu.memory_space<vmem>>, vector<8x16xf32>
    tpu.vector_store %arg8[%c0_124, %c290], %93 {strides = array<i32>} : memref<16x326xf32, #tpu.memory_space<vmem>>, vector<8x16xf32>,
    %c0_125 = arith.constant 0 : index
    %c0_126 = arith.constant 0 : index
    %c240_127 = arith.constant 240 : index
    %95 = vector.load %arg2[%c0_125, %c0_126, %c240_127] : memref<1x8x256xf32, #tpu.memory_space<vmem>>, vector<1x8x16xf32>
    %96 = vector.shape_cast %95 : vector<1x8x16xf32> to vector<8x16xf32>
    %c8_128 = arith.constant 8 : index
    %c290_129 = arith.constant 290 : index
    %97 = vector.load %arg8[%c8_128, %c290_129] : memref<16x326xf32, #tpu.memory_space<vmem>>, vector<8x16xf32>
    tpu.vector_store %arg8[%c8_128, %c290_129], %96 {strides = array<i32>} : memref<16x326xf32, #tpu.memory_space<vmem>>, vector<8x16xf32>,
    %c0_130 = arith.constant 0 : index
    %c0_131 = arith.constant 0 : index
    %98 = vector.load %arg8[%c0_130, %c0_131] : memref<16x326xf32, #tpu.memory_space<vmem>>, vector<16x288xf32>
    %c0_132 = arith.constant 0 : index
    %c0_133 = arith.constant 0 : index
    %99 = vector.load %arg9[%c0_132, %c0_133] : memref<144x288xf32, #tpu.memory_space<vmem>>, vector<16x288xf32>
    tpu.vector_store %arg9[%c0_132, %c0_133], %98 {strides = array<i32>} : memref<144x288xf32, #tpu.memory_space<vmem>>, vector<16x288xf32>,
    %c0_134 = arith.constant 0 : index
    %c1 = arith.constant 1 : index
    %100 = vector.load %arg8[%c0_134, %c1] : memref<16x326xf32, #tpu.memory_space<vmem>>, vector<16x288xf32>
    %c16_135 = arith.constant 16 : index
    %c0_136 = arith.constant 0 : index
    %101 = vector.load %arg9[%c16_135, %c0_136] : memref<144x288xf32, #tpu.memory_space<vmem>>, vector<16x288xf32>
    tpu.vector_store %arg9[%c16_135, %c0_136], %100 {strides = array<i32>} : memref<144x288xf32, #tpu.memory_space<vmem>>, vector<16x288xf32>,
    %c0_137 = arith.constant 0 : index
    %c2 = arith.constant 2 : index
    %102 = vector.load %arg8[%c0_137, %c2] : memref<16x326xf32, #tpu.memory_space<vmem>>, vector<16x288xf32>
    %c32_138 = arith.constant 32 : index
    %c0_139 = arith.constant 0 : index
    %103 = vector.load %arg9[%c32_138, %c0_139] : memref<144x288xf32, #tpu.memory_space<vmem>>, vector<16x288xf32>
    tpu.vector_store %arg9[%c32_138, %c0_139], %102 {strides = array<i32>} : memref<144x288xf32, #tpu.memory_space<vmem>>, vector<16x288xf32>,
    %c0_140 = arith.constant 0 : index
    %c18 = arith.constant 18 : index
    %104 = vector.load %arg8[%c0_140, %c18] : memref<16x326xf32, #tpu.memory_space<vmem>>, vector<16x288xf32>
    %c48_141 = arith.constant 48 : index
    %c0_142 = arith.constant 0 : index
    %105 = vector.load %arg9[%c48_141, %c0_142] : memref<144x288xf32, #tpu.memory_space<vmem>>, vector<16x288xf32>
    tpu.vector_store %arg9[%c48_141, %c0_142], %104 {strides = array<i32>} : memref<144x288xf32, #tpu.memory_space<vmem>>, vector<16x288xf32>,
    %c0_143 = arith.constant 0 : index
    %c19 = arith.constant 19 : index
    %106 = vector.load %arg8[%c0_143, %c19] : memref<16x326xf32, #tpu.memory_space<vmem>>, vector<16x288xf32>
    %c64_144 = arith.constant 64 : index
    %c0_145 = arith.constant 0 : index
    %107 = vector.load %arg9[%c64_144, %c0_145] : memref<144x288xf32, #tpu.memory_space<vmem>>, vector<16x288xf32>
    tpu.vector_store %arg9[%c64_144, %c0_145], %106 {strides = array<i32>} : memref<144x288xf32, #tpu.memory_space<vmem>>, vector<16x288xf32>,
    %c0_146 = arith.constant 0 : index
    %c20_147 = arith.constant 20 : index
    %108 = vector.load %arg8[%c0_146, %c20_147] : memref<16x326xf32, #tpu.memory_space<vmem>>, vector<16x288xf32>
    %c80_148 = arith.constant 80 : index
    %c0_149 = arith.constant 0 : index
    %109 = vector.load %arg9[%c80_148, %c0_149] : memref<144x288xf32, #tpu.memory_space<vmem>>, vector<16x288xf32>
    tpu.vector_store %arg9[%c80_148, %c0_149], %108 {strides = array<i32>} : memref<144x288xf32, #tpu.memory_space<vmem>>, vector<16x288xf32>,
    %c0_150 = arith.constant 0 : index
    %c36 = arith.constant 36 : index
    %110 = vector.load %arg8[%c0_150, %c36] : memref<16x326xf32, #tpu.memory_space<vmem>>, vector<16x288xf32>
    %c96_151 = arith.constant 96 : index
    %c0_152 = arith.constant 0 : index
    %111 = vector.load %arg9[%c96_151, %c0_152] : memref<144x288xf32, #tpu.memory_space<vmem>>, vector<16x288xf32>
    tpu.vector_store %arg9[%c96_151, %c0_152], %110 {strides = array<i32>} : memref<144x288xf32, #tpu.memory_space<vmem>>, vector<16x288xf32>,
    %c0_153 = arith.constant 0 : index
    %c37 = arith.constant 37 : index
    %112 = vector.load %arg8[%c0_153, %c37] : memref<16x326xf32, #tpu.memory_space<vmem>>, vector<16x288xf32>
    %c112_154 = arith.constant 112 : index
    %c0_155 = arith.constant 0 : index
    %113 = vector.load %arg9[%c112_154, %c0_155] : memref<144x288xf32, #tpu.memory_space<vmem>>, vector<16x288xf32>
    tpu.vector_store %arg9[%c112_154, %c0_155], %112 {strides = array<i32>} : memref<144x288xf32, #tpu.memory_space<vmem>>, vector<16x288xf32>,
    %c0_156 = arith.constant 0 : index
    %c38_157 = arith.constant 38 : index
    %114 = vector.load %arg8[%c0_156, %c38_157] : memref<16x326xf32, #tpu.memory_space<vmem>>, vector<16x288xf32>
    %c128_158 = arith.constant 128 : index
    %c0_159 = arith.constant 0 : index
    %115 = vector.load %arg9[%c128_158, %c0_159] : memref<144x288xf32, #tpu.memory_space<vmem>>, vector<16x288xf32>
    tpu.vector_store %arg9[%c128_158, %c0_159], %114 {strides = array<i32>} : memref<144x288xf32, #tpu.memory_space<vmem>>, vector<16x288xf32>,
    %c0_160 = arith.constant 0 : index
    %c0_161 = arith.constant 0 : index
    %116 = vector.load %arg3[%c0_160, %c0_161] : memref<4x144xf32, #tpu.memory_space<vmem>>, vector<4x144xf32>
    %c0_162 = arith.constant 0 : index
    %c0_163 = arith.constant 0 : index
    %117 = vector.load %arg9[%c0_162, %c0_163] : memref<144x288xf32, #tpu.memory_space<vmem>>, vector<144x288xf32>
    %cst_164 = arith.constant dense<0.000000e+00> : vector<4x288xf32>
    %118 = tpu.matmul %116, %117, %cst_164 {dimension_numbers = #tpu.dot_dimension_numbers<[1], [0], [0], [1], [0, 0, 1, 1], [], []>} : vector<4x144xf32>, vector<144x288xf32>, vector<4x288xf32> -> vector<4x288xf32>
    %c0_165 = arith.constant 0 : index
    %c0_166 = arith.constant 0 : index
    %119 = vector.load %arg4[%c0_165, %c0_166] : memref<4x1xf32, #tpu.memory_space<vmem>>, vector<4x1xf32>
    %120 = vector.broadcast %119 : vector<4x1xf32> to vector<4x288xf32>
    %121 = arith.addf %118, %120 : vector<4x288xf32>
    %c0_167 = arith.constant 0 : index
    %c0_168 = arith.constant 0 : index
    %122 = vector.load %arg10[%c0_167, %c0_168] : memref<4x288xf32, #tpu.memory_space<vmem>>, vector<4x288xf32>
    tpu.vector_store %arg10[%c0_167, %c0_168], %121 {strides = array<i32>} : memref<4x288xf32, #tpu.memory_space<vmem>>, vector<4x288xf32>,
    %c0_169 = arith.constant 0 : index
    %c1_170 = arith.constant 1 : index
    %123 = vector.load %arg10[%c0_169, %c1_170] : memref<4x288xf32, #tpu.memory_space<vmem>>, vector<4x16xf32>
    %c0_171 = arith.constant 0 : index
    %c0_172 = arith.constant 0 : index
    %c0_173 = arith.constant 0 : index
    %124 = vector.load %arg11[%c0_171, %c0_172, %c0_173] : memref<4x16x16xf32, #tpu.memory_space<vmem>>, vector<4x1x16xf32>
    %125 = vector.shape_cast %124 : vector<4x1x16xf32> to vector<4x16xf32>
    %126 = vector.shape_cast %123 : vector<4x16xf32> to vector<4x1x16xf32>
    tpu.vector_store %arg11[%c0_171, %c0_172, %c0_173], %126 {strides = array<i32>} : memref<4x16x16xf32, #tpu.memory_space<vmem>>, vector<4x1x16xf32>,
    %c0_174 = arith.constant 0 : index
    %c19_175 = arith.constant 19 : index
    %127 = vector.load %arg10[%c0_174, %c19_175] : memref<4x288xf32, #tpu.memory_space<vmem>>, vector<4x16xf32>
    %c0_176 = arith.constant 0 : index
    %c1_177 = arith.constant 1 : index
    %c0_178 = arith.constant 0 : index
    %128 = vector.load %arg11[%c0_176, %c1_177, %c0_178] : memref<4x16x16xf32, #tpu.memory_space<vmem>>, vector<4x1x16xf32>
    %129 = vector.shape_cast %128 : vector<4x1x16xf32> to vector<4x16xf32>
    %130 = vector.shape_cast %127 : vector<4x16xf32> to vector<4x1x16xf32>
    tpu.vector_store %arg11[%c0_176, %c1_177, %c0_178], %130 {strides = array<i32>} : memref<4x16x16xf32, #tpu.memory_space<vmem>>, vector<4x1x16xf32>,
    %c0_179 = arith.constant 0 : index
    %c37_180 = arith.constant 37 : index
    %131 = vector.load %arg10[%c0_179, %c37_180] : memref<4x288xf32, #tpu.memory_space<vmem>>, vector<4x16xf32>
    %c0_181 = arith.constant 0 : index
    %c2_182 = arith.constant 2 : index
    %c0_183 = arith.constant 0 : index
    %132 = vector.load %arg11[%c0_181, %c2_182, %c0_183] : memref<4x16x16xf32, #tpu.memory_space<vmem>>, vector<4x1x16xf32>
    %133 = vector.shape_cast %132 : vector<4x1x16xf32> to vector<4x16xf32>
    %134 = vector.shape_cast %131 : vector<4x16xf32> to vector<4x1x16xf32>
    tpu.vector_store %arg11[%c0_181, %c2_182, %c0_183], %134 {strides = array<i32>} : memref<4x16x16xf32, #tpu.memory_space<vmem>>, vector<4x1x16xf32>,
    %c0_184 = arith.constant 0 : index
    %c55 = arith.constant 55 : index
    %135 = vector.load %arg10[%c0_184, %c55] : memref<4x288xf32, #tpu.memory_space<vmem>>, vector<4x16xf32>
    %c0_185 = arith.constant 0 : index
    %c3 = arith.constant 3 : index
    %c0_186 = arith.constant 0 : index
    %136 = vector.load %arg11[%c0_185, %c3, %c0_186] : memref<4x16x16xf32, #tpu.memory_space<vmem>>, vector<4x1x16xf32>
    %137 = vector.shape_cast %136 : vector<4x1x16xf32> to vector<4x16xf32>
    %138 = vector.shape_cast %135 : vector<4x16xf32> to vector<4x1x16xf32>
    tpu.vector_store %arg11[%c0_185, %c3, %c0_186], %138 {strides = array<i32>} : memref<4x16x16xf32, #tpu.memory_space<vmem>>, vector<4x1x16xf32>,
    %c0_187 = arith.constant 0 : index
    %c73 = arith.constant 73 : index
    %139 = vector.load %arg10[%c0_187, %c73] : memref<4x288xf32, #tpu.memory_space<vmem>>, vector<4x16xf32>
    %c0_188 = arith.constant 0 : index
    %c4 = arith.constant 4 : index
    %c0_189 = arith.constant 0 : index
    %140 = vector.load %arg11[%c0_188, %c4, %c0_189] : memref<4x16x16xf32, #tpu.memory_space<vmem>>, vector<4x1x16xf32>
    %141 = vector.shape_cast %140 : vector<4x1x16xf32> to vector<4x16xf32>
    %142 = vector.shape_cast %139 : vector<4x16xf32> to vector<4x1x16xf32>
    tpu.vector_store %arg11[%c0_188, %c4, %c0_189], %142 {strides = array<i32>} : memref<4x16x16xf32, #tpu.memory_space<vmem>>, vector<4x1x16xf32>,
    %c0_190 = arith.constant 0 : index
    %c91 = arith.constant 91 : index
    %143 = vector.load %arg10[%c0_190, %c91] : memref<4x288xf32, #tpu.memory_space<vmem>>, vector<4x16xf32>
    %c0_191 = arith.constant 0 : index
    %c5 = arith.constant 5 : index
    %c0_192 = arith.constant 0 : index
    %144 = vector.load %arg11[%c0_191, %c5, %c0_192] : memref<4x16x16xf32, #tpu.memory_space<vmem>>, vector<4x1x16xf32>
    %145 = vector.shape_cast %144 : vector<4x1x16xf32> to vector<4x16xf32>
    %146 = vector.shape_cast %143 : vector<4x16xf32> to vector<4x1x16xf32>
    tpu.vector_store %arg11[%c0_191, %c5, %c0_192], %146 {strides = array<i32>} : memref<4x16x16xf32, #tpu.memory_space<vmem>>, vector<4x1x16xf32>,
    %c0_193 = arith.constant 0 : index
    %c109 = arith.constant 109 : index
    %147 = vector.load %arg10[%c0_193, %c109] : memref<4x288xf32, #tpu.memory_space<vmem>>, vector<4x16xf32>
    %c0_194 = arith.constant 0 : index
    %c6 = arith.constant 6 : index
    %c0_195 = arith.constant 0 : index
    %148 = vector.load %arg11[%c0_194, %c6, %c0_195] : memref<4x16x16xf32, #tpu.memory_space<vmem>>, vector<4x1x16xf32>
    %149 = vector.shape_cast %148 : vector<4x1x16xf32> to vector<4x16xf32>
    %150 = vector.shape_cast %147 : vector<4x16xf32> to vector<4x1x16xf32>
    tpu.vector_store %arg11[%c0_194, %c6, %c0_195], %150 {strides = array<i32>} : memref<4x16x16xf32, #tpu.memory_space<vmem>>, vector<4x1x16xf32>,
    %c0_196 = arith.constant 0 : index
    %c127 = arith.constant 127 : index
    %151 = vector.load %arg10[%c0_196, %c127] : memref<4x288xf32, #tpu.memory_space<vmem>>, vector<4x16xf32>
    %c0_197 = arith.constant 0 : index
    %c7 = arith.constant 7 : index
    %c0_198 = arith.constant 0 : index
    %152 = vector.load %arg11[%c0_197, %c7, %c0_198] : memref<4x16x16xf32, #tpu.memory_space<vmem>>, vector<4x1x16xf32>
    %153 = vector.shape_cast %152 : vector<4x1x16xf32> to vector<4x16xf32>
    %154 = vector.shape_cast %151 : vector<4x16xf32> to vector<4x1x16xf32>
    tpu.vector_store %arg11[%c0_197, %c7, %c0_198], %154 {strides = array<i32>} : memref<4x16x16xf32, #tpu.memory_space<vmem>>, vector<4x1x16xf32>,
    %c0_199 = arith.constant 0 : index
    %c145 = arith.constant 145 : index
    %155 = vector.load %arg10[%c0_199, %c145] : memref<4x288xf32, #tpu.memory_space<vmem>>, vector<4x16xf32>
    %c0_200 = arith.constant 0 : index
    %c8_201 = arith.constant 8 : index
    %c0_202 = arith.constant 0 : index
    %156 = vector.load %arg11[%c0_200, %c8_201, %c0_202] : memref<4x16x16xf32, #tpu.memory_space<vmem>>, vector<4x1x16xf32>
    %157 = vector.shape_cast %156 : vector<4x1x16xf32> to vector<4x16xf32>
    %158 = vector.shape_cast %155 : vector<4x16xf32> to vector<4x1x16xf32>
    tpu.vector_store %arg11[%c0_200, %c8_201, %c0_202], %158 {strides = array<i32>} : memref<4x16x16xf32, #tpu.memory_space<vmem>>, vector<4x1x16xf32>,
    %c0_203 = arith.constant 0 : index
    %c163 = arith.constant 163 : index
    %159 = vector.load %arg10[%c0_203, %c163] : memref<4x288xf32, #tpu.memory_space<vmem>>, vector<4x16xf32>
    %c0_204 = arith.constant 0 : index
    %c9 = arith.constant 9 : index
    %c0_205 = arith.constant 0 : index
    %160 = vector.load %arg11[%c0_204, %c9, %c0_205] : memref<4x16x16xf32, #tpu.memory_space<vmem>>, vector<4x1x16xf32>
    %161 = vector.shape_cast %160 : vector<4x1x16xf32> to vector<4x16xf32>
    %162 = vector.shape_cast %159 : vector<4x16xf32> to vector<4x1x16xf32>
    tpu.vector_store %arg11[%c0_204, %c9, %c0_205], %162 {strides = array<i32>} : memref<4x16x16xf32, #tpu.memory_space<vmem>>, vector<4x1x16xf32>,
    %c0_206 = arith.constant 0 : index
    %c181 = arith.constant 181 : index
    %163 = vector.load %arg10[%c0_206, %c181] : memref<4x288xf32, #tpu.memory_space<vmem>>, vector<4x16xf32>
    %c0_207 = arith.constant 0 : index
    %c10 = arith.constant 10 : index
    %c0_208 = arith.constant 0 : index
    %164 = vector.load %arg11[%c0_207, %c10, %c0_208] : memref<4x16x16xf32, #tpu.memory_space<vmem>>, vector<4x1x16xf32>
    %165 = vector.shape_cast %164 : vector<4x1x16xf32> to vector<4x16xf32>
    %166 = vector.shape_cast %163 : vector<4x16xf32> to vector<4x1x16xf32>
    tpu.vector_store %arg11[%c0_207, %c10, %c0_208], %166 {strides = array<i32>} : memref<4x16x16xf32, #tpu.memory_space<vmem>>, vector<4x1x16xf32>,
    %c0_209 = arith.constant 0 : index
    %c199 = arith.constant 199 : index
    %167 = vector.load %arg10[%c0_209, %c199] : memref<4x288xf32, #tpu.memory_space<vmem>>, vector<4x16xf32>
    %c0_210 = arith.constant 0 : index
    %c11 = arith.constant 11 : index
    %c0_211 = arith.constant 0 : index
    %168 = vector.load %arg11[%c0_210, %c11, %c0_211] : memref<4x16x16xf32, #tpu.memory_space<vmem>>, vector<4x1x16xf32>
    %169 = vector.shape_cast %168 : vector<4x1x16xf32> to vector<4x16xf32>
    %170 = vector.shape_cast %167 : vector<4x16xf32> to vector<4x1x16xf32>
    tpu.vector_store %arg11[%c0_210, %c11, %c0_211], %170 {strides = array<i32>} : memref<4x16x16xf32, #tpu.memory_space<vmem>>, vector<4x1x16xf32>,
    %c0_212 = arith.constant 0 : index
    %c217 = arith.constant 217 : index
    %171 = vector.load %arg10[%c0_212, %c217] : memref<4x288xf32, #tpu.memory_space<vmem>>, vector<4x16xf32>
    %c0_213 = arith.constant 0 : index
    %c12 = arith.constant 12 : index
    %c0_214 = arith.constant 0 : index
    %172 = vector.load %arg11[%c0_213, %c12, %c0_214] : memref<4x16x16xf32, #tpu.memory_space<vmem>>, vector<4x1x16xf32>
    %173 = vector.shape_cast %172 : vector<4x1x16xf32> to vector<4x16xf32>
    %174 = vector.shape_cast %171 : vector<4x16xf32> to vector<4x1x16xf32>
    tpu.vector_store %arg11[%c0_213, %c12, %c0_214], %174 {strides = array<i32>} : memref<4x16x16xf32, #tpu.memory_space<vmem>>, vector<4x1x16xf32>,
    %c0_215 = arith.constant 0 : index
    %c235 = arith.constant 235 : index
    %175 = vector.load %arg10[%c0_215, %c235] : memref<4x288xf32, #tpu.memory_space<vmem>>, vector<4x16xf32>
    %c0_216 = arith.constant 0 : index
    %c13 = arith.constant 13 : index
    %c0_217 = arith.constant 0 : index
    %176 = vector.load %arg11[%c0_216, %c13, %c0_217] : memref<4x16x16xf32, #tpu.memory_space<vmem>>, vector<4x1x16xf32>
    %177 = vector.shape_cast %176 : vector<4x1x16xf32> to vector<4x16xf32>
    %178 = vector.shape_cast %175 : vector<4x16xf32> to vector<4x1x16xf32>
    tpu.vector_store %arg11[%c0_216, %c13, %c0_217], %178 {strides = array<i32>} : memref<4x16x16xf32, #tpu.memory_space<vmem>>, vector<4x1x16xf32>,
    %c0_218 = arith.constant 0 : index
    %c253 = arith.constant 253 : index
    %179 = vector.load %arg10[%c0_218, %c253] : memref<4x288xf32, #tpu.memory_space<vmem>>, vector<4x16xf32>
    %c0_219 = arith.constant 0 : index
    %c14 = arith.constant 14 : index
    %c0_220 = arith.constant 0 : index
    %180 = vector.load %arg11[%c0_219, %c14, %c0_220] : memref<4x16x16xf32, #tpu.memory_space<vmem>>, vector<4x1x16xf32>
    %181 = vector.shape_cast %180 : vector<4x1x16xf32> to vector<4x16xf32>
    %182 = vector.shape_cast %179 : vector<4x16xf32> to vector<4x1x16xf32>
    tpu.vector_store %arg11[%c0_219, %c14, %c0_220], %182 {strides = array<i32>} : memref<4x16x16xf32, #tpu.memory_space<vmem>>, vector<4x1x16xf32>,
    %c0_221 = arith.constant 0 : index
    %c271 = arith.constant 271 : index
    %183 = vector.load %arg10[%c0_221, %c271] : memref<4x288xf32, #tpu.memory_space<vmem>>, vector<4x16xf32>
    %c0_222 = arith.constant 0 : index
    %c15 = arith.constant 15 : index
    %c0_223 = arith.constant 0 : index
    %184 = vector.load %arg11[%c0_222, %c15, %c0_223] : memref<4x16x16xf32, #tpu.memory_space<vmem>>, vector<4x1x16xf32>
    %185 = vector.shape_cast %184 : vector<4x1x16xf32> to vector<4x16xf32>
    %186 = vector.shape_cast %183 : vector<4x16xf32> to vector<4x1x16xf32>
    tpu.vector_store %arg11[%c0_222, %c15, %c0_223], %186 {strides = array<i32>} : memref<4x16x16xf32, #tpu.memory_space<vmem>>, vector<4x1x16xf32>,
    %c0_224 = arith.constant 0 : index
    %c0_225 = arith.constant 0 : index
    %c0_226 = arith.constant 0 : index
    %187 = vector.load %arg11[%c0_224, %c0_225, %c0_226] : memref<4x16x16xf32, #tpu.memory_space<vmem>>, vector<1x16x16xf32>
    %188 = vector.shape_cast %187 : vector<1x16x16xf32> to vector<16x16xf32>
    %c1_227 = arith.constant 1 : index
    %c0_228 = arith.constant 0 : index
    %c0_229 = arith.constant 0 : index
    %189 = vector.load %arg11[%c1_227, %c0_228, %c0_229] : memref<4x16x16xf32, #tpu.memory_space<vmem>>, vector<1x16x16xf32>
    %190 = vector.shape_cast %189 : vector<1x16x16xf32> to vector<16x16xf32>
    %c2_230 = arith.constant 2 : index
    %c0_231 = arith.constant 0 : index
    %c0_232 = arith.constant 0 : index
    %191 = vector.load %arg11[%c2_230, %c0_231, %c0_232] : memref<4x16x16xf32, #tpu.memory_space<vmem>>, vector<1x16x16xf32>
    %192 = vector.shape_cast %191 : vector<1x16x16xf32> to vector<16x16xf32>
    %c3_233 = arith.constant 3 : index
    %c0_234 = arith.constant 0 : index
    %c0_235 = arith.constant 0 : index
    %193 = vector.load %arg11[%c3_233, %c0_234, %c0_235] : memref<4x16x16xf32, #tpu.memory_space<vmem>>, vector<1x16x16xf32>
    %194 = vector.shape_cast %193 : vector<1x16x16xf32> to vector<16x16xf32>
    %cst_236 = arith.constant dense<0.000000e+00> : vector<16x16xf32>
    %195 = tpu.matmul %188, %190, %cst_236 {dimension_numbers = #tpu.dot_dimension_numbers<[1], [0], [0], [1], [0, 0, 1, 1], [], []>} : vector<16x16xf32>, vector<16x16xf32>, vector<16x16xf32> -> vector<16x16xf32>
    %196 = arith.negf %195 : vector<16x16xf32>
    %197 = math.exp %196 : vector<16x16xf32>
    %cst_237 = arith.constant 1.000000e+00 : f32
    %198 = vector.broadcast %cst_237 : f32 to vector<16x16xf32>
    %199 = arith.addf %198, %197 : vector<16x16xf32>
    %200 = arith.divf %198, %199 : vector<16x16xf32>
    %cst_238 = arith.constant dense<0.000000e+00> : vector<16x16xf32>
    %201 = tpu.matmul %192, %194, %cst_238 {dimension_numbers = #tpu.dot_dimension_numbers<[1], [0], [0], [1], [0, 0, 1, 1], [], []>} : vector<16x16xf32>, vector<16x16xf32>, vector<16x16xf32> -> vector<16x16xf32>
    %202 = arith.negf %201 : vector<16x16xf32>
    %203 = math.exp %202 : vector<16x16xf32>
    %cst_239 = arith.constant 1.000000e+00 : f32
    %204 = vector.broadcast %cst_239 : f32 to vector<16x16xf32>
    %205 = arith.addf %204, %203 : vector<16x16xf32>
    %206 = arith.divf %204, %205 : vector<16x16xf32>
    %207 = vector.extract_strided_slice %200 {offsets = [0, 0], sizes = [1, 16], strides = [1, 1]} : vector<16x16xf32> to vector<1x16xf32>
    %c0_240 = arith.constant 0 : index
    %c0_241 = arith.constant 0 : index
    %208 = vector.load %arg12[%c0_240, %c0_241] : memref<2x256xf32, #tpu.memory_space<vmem>>, vector<1x16xf32>
    tpu.vector_store %arg12[%c0_240, %c0_241], %207 {strides = array<i32>} : memref<2x256xf32, #tpu.memory_space<vmem>>, vector<1x16xf32>,
    %209 = vector.extract_strided_slice %206 {offsets = [0, 0], sizes = [1, 16], strides = [1, 1]} : vector<16x16xf32> to vector<1x16xf32>
    %c1_242 = arith.constant 1 : index
    %c0_243 = arith.constant 0 : index
    %210 = vector.load %arg12[%c1_242, %c0_243] : memref<2x256xf32, #tpu.memory_space<vmem>>, vector<1x16xf32>
    tpu.vector_store %arg12[%c1_242, %c0_243], %209 {strides = array<i32>} : memref<2x256xf32, #tpu.memory_space<vmem>>, vector<1x16xf32>,
    %211 = vector.extract_strided_slice %200 {offsets = [1, 0], sizes = [1, 16], strides = [1, 1]} : vector<16x16xf32> to vector<1x16xf32>
    %c0_244 = arith.constant 0 : index
    %c16_245 = arith.constant 16 : index
    %212 = vector.load %arg12[%c0_244, %c16_245] : memref<2x256xf32, #tpu.memory_space<vmem>>, vector<1x16xf32>
    tpu.vector_store %arg12[%c0_244, %c16_245], %211 {strides = array<i32>} : memref<2x256xf32, #tpu.memory_space<vmem>>, vector<1x16xf32>,
    %213 = vector.extract_strided_slice %206 {offsets = [1, 0], sizes = [1, 16], strides = [1, 1]} : vector<16x16xf32> to vector<1x16xf32>
    %c1_246 = arith.constant 1 : index
    %c16_247 = arith.constant 16 : index
    %214 = vector.load %arg12[%c1_246, %c16_247] : memref<2x256xf32, #tpu.memory_space<vmem>>, vector<1x16xf32>
    tpu.vector_store %arg12[%c1_246, %c16_247], %213 {strides = array<i32>} : memref<2x256xf32, #tpu.memory_space<vmem>>, vector<1x16xf32>,
    %215 = vector.extract_strided_slice %200 {offsets = [2, 0], sizes = [1, 16], strides = [1, 1]} : vector<16x16xf32> to vector<1x16xf32>
    %c0_248 = arith.constant 0 : index
    %c32_249 = arith.constant 32 : index
    %216 = vector.load %arg12[%c0_248, %c32_249] : memref<2x256xf32, #tpu.memory_space<vmem>>, vector<1x16xf32>
    tpu.vector_store %arg12[%c0_248, %c32_249], %215 {strides = array<i32>} : memref<2x256xf32, #tpu.memory_space<vmem>>, vector<1x16xf32>,
    %217 = vector.extract_strided_slice %206 {offsets = [2, 0], sizes = [1, 16], strides = [1, 1]} : vector<16x16xf32> to vector<1x16xf32>
    %c1_250 = arith.constant 1 : index
    %c32_251 = arith.constant 32 : index
    %218 = vector.load %arg12[%c1_250, %c32_251] : memref<2x256xf32, #tpu.memory_space<vmem>>, vector<1x16xf32>
    tpu.vector_store %arg12[%c1_250, %c32_251], %217 {strides = array<i32>} : memref<2x256xf32, #tpu.memory_space<vmem>>, vector<1x16xf32>,
    %219 = vector.extract_strided_slice %200 {offsets = [3, 0], sizes = [1, 16], strides = [1, 1]} : vector<16x16xf32> to vector<1x16xf32>
    %c0_252 = arith.constant 0 : index
    %c48_253 = arith.constant 48 : index
    %220 = vector.load %arg12[%c0_252, %c48_253] : memref<2x256xf32, #tpu.memory_space<vmem>>, vector<1x16xf32>
    tpu.vector_store %arg12[%c0_252, %c48_253], %219 {strides = array<i32>} : memref<2x256xf32, #tpu.memory_space<vmem>>, vector<1x16xf32>,
    %221 = vector.extract_strided_slice %206 {offsets = [3, 0], sizes = [1, 16], strides = [1, 1]} : vector<16x16xf32> to vector<1x16xf32>
    %c1_254 = arith.constant 1 : index
    %c48_255 = arith.constant 48 : index
    %222 = vector.load %arg12[%c1_254, %c48_255] : memref<2x256xf32, #tpu.memory_space<vmem>>, vector<1x16xf32>
    tpu.vector_store %arg12[%c1_254, %c48_255], %221 {strides = array<i32>} : memref<2x256xf32, #tpu.memory_space<vmem>>, vector<1x16xf32>,
    %223 = vector.extract_strided_slice %200 {offsets = [4, 0], sizes = [1, 16], strides = [1, 1]} : vector<16x16xf32> to vector<1x16xf32>
    %c0_256 = arith.constant 0 : index
    %c64_257 = arith.constant 64 : index
    %224 = vector.load %arg12[%c0_256, %c64_257] : memref<2x256xf32, #tpu.memory_space<vmem>>, vector<1x16xf32>
    tpu.vector_store %arg12[%c0_256, %c64_257], %223 {strides = array<i32>} : memref<2x256xf32, #tpu.memory_space<vmem>>, vector<1x16xf32>,
    %225 = vector.extract_strided_slice %206 {offsets = [4, 0], sizes = [1, 16], strides = [1, 1]} : vector<16x16xf32> to vector<1x16xf32>
    %c1_258 = arith.constant 1 : index
    %c64_259 = arith.constant 64 : index
    %226 = vector.load %arg12[%c1_258, %c64_259] : memref<2x256xf32, #tpu.memory_space<vmem>>, vector<1x16xf32>
    tpu.vector_store %arg12[%c1_258, %c64_259], %225 {strides = array<i32>} : memref<2x256xf32, #tpu.memory_space<vmem>>, vector<1x16xf32>,
    %227 = vector.extract_strided_slice %200 {offsets = [5, 0], sizes = [1, 16], strides = [1, 1]} : vector<16x16xf32> to vector<1x16xf32>
    %c0_260 = arith.constant 0 : index
    %c80_261 = arith.constant 80 : index
    %228 = vector.load %arg12[%c0_260, %c80_261] : memref<2x256xf32, #tpu.memory_space<vmem>>, vector<1x16xf32>
    tpu.vector_store %arg12[%c0_260, %c80_261], %227 {strides = array<i32>} : memref<2x256xf32, #tpu.memory_space<vmem>>, vector<1x16xf32>,
    %229 = vector.extract_strided_slice %206 {offsets = [5, 0], sizes = [1, 16], strides = [1, 1]} : vector<16x16xf32> to vector<1x16xf32>
    %c1_262 = arith.constant 1 : index
    %c80_263 = arith.constant 80 : index
    %230 = vector.load %arg12[%c1_262, %c80_263] : memref<2x256xf32, #tpu.memory_space<vmem>>, vector<1x16xf32>
    tpu.vector_store %arg12[%c1_262, %c80_263], %229 {strides = array<i32>} : memref<2x256xf32, #tpu.memory_space<vmem>>, vector<1x16xf32>,
    %231 = vector.extract_strided_slice %200 {offsets = [6, 0], sizes = [1, 16], strides = [1, 1]} : vector<16x16xf32> to vector<1x16xf32>
    %c0_264 = arith.constant 0 : index
    %c96_265 = arith.constant 96 : index
    %232 = vector.load %arg12[%c0_264, %c96_265] : memref<2x256xf32, #tpu.memory_space<vmem>>, vector<1x16xf32>
    tpu.vector_store %arg12[%c0_264, %c96_265], %231 {strides = array<i32>} : memref<2x256xf32, #tpu.memory_space<vmem>>, vector<1x16xf32>,
    %233 = vector.extract_strided_slice %206 {offsets = [6, 0], sizes = [1, 16], strides = [1, 1]} : vector<16x16xf32> to vector<1x16xf32>
    %c1_266 = arith.constant 1 : index
    %c96_267 = arith.constant 96 : index
    %234 = vector.load %arg12[%c1_266, %c96_267] : memref<2x256xf32, #tpu.memory_space<vmem>>, vector<1x16xf32>
    tpu.vector_store %arg12[%c1_266, %c96_267], %233 {strides = array<i32>} : memref<2x256xf32, #tpu.memory_space<vmem>>, vector<1x16xf32>,
    %235 = vector.extract_strided_slice %200 {offsets = [7, 0], sizes = [1, 16], strides = [1, 1]} : vector<16x16xf32> to vector<1x16xf32>
    %c0_268 = arith.constant 0 : index
    %c112_269 = arith.constant 112 : index
    %236 = vector.load %arg12[%c0_268, %c112_269] : memref<2x256xf32, #tpu.memory_space<vmem>>, vector<1x16xf32>
    tpu.vector_store %arg12[%c0_268, %c112_269], %235 {strides = array<i32>} : memref<2x256xf32, #tpu.memory_space<vmem>>, vector<1x16xf32>,
    %237 = vector.extract_strided_slice %206 {offsets = [7, 0], sizes = [1, 16], strides = [1, 1]} : vector<16x16xf32> to vector<1x16xf32>
    %c1_270 = arith.constant 1 : index
    %c112_271 = arith.constant 112 : index
    %238 = vector.load %arg12[%c1_270, %c112_271] : memref<2x256xf32, #tpu.memory_space<vmem>>, vector<1x16xf32>
    tpu.vector_store %arg12[%c1_270, %c112_271], %237 {strides = array<i32>} : memref<2x256xf32, #tpu.memory_space<vmem>>, vector<1x16xf32>,
    %239 = vector.extract_strided_slice %200 {offsets = [8, 0], sizes = [1, 16], strides = [1, 1]} : vector<16x16xf32> to vector<1x16xf32>
    %c0_272 = arith.constant 0 : index
    %c128_273 = arith.constant 128 : index
    %240 = vector.load %arg12[%c0_272, %c128_273] : memref<2x256xf32, #tpu.memory_space<vmem>>, vector<1x16xf32>
    tpu.vector_store %arg12[%c0_272, %c128_273], %239 {strides = array<i32>} : memref<2x256xf32, #tpu.memory_space<vmem>>, vector<1x16xf32>,
    %241 = vector.extract_strided_slice %206 {offsets = [8, 0], sizes = [1, 16], strides = [1, 1]} : vector<16x16xf32> to vector<1x16xf32>
    %c1_274 = arith.constant 1 : index
    %c128_275 = arith.constant 128 : index
    %242 = vector.load %arg12[%c1_274, %c128_275] : memref<2x256xf32, #tpu.memory_space<vmem>>, vector<1x16xf32>
    tpu.vector_store %arg12[%c1_274, %c128_275], %241 {strides = array<i32>} : memref<2x256xf32, #tpu.memory_space<vmem>>, vector<1x16xf32>,
    %243 = vector.extract_strided_slice %200 {offsets = [9, 0], sizes = [1, 16], strides = [1, 1]} : vector<16x16xf32> to vector<1x16xf32>
    %c0_276 = arith.constant 0 : index
    %c144_277 = arith.constant 144 : index
    %244 = vector.load %arg12[%c0_276, %c144_277] : memref<2x256xf32, #tpu.memory_space<vmem>>, vector<1x16xf32>
    tpu.vector_store %arg12[%c0_276, %c144_277], %243 {strides = array<i32>} : memref<2x256xf32, #tpu.memory_space<vmem>>, vector<1x16xf32>,
    %245 = vector.extract_strided_slice %206 {offsets = [9, 0], sizes = [1, 16], strides = [1, 1]} : vector<16x16xf32> to vector<1x16xf32>
    %c1_278 = arith.constant 1 : index
    %c144_279 = arith.constant 144 : index
    %246 = vector.load %arg12[%c1_278, %c144_279] : memref<2x256xf32, #tpu.memory_space<vmem>>, vector<1x16xf32>
    tpu.vector_store %arg12[%c1_278, %c144_279], %245 {strides = array<i32>} : memref<2x256xf32, #tpu.memory_space<vmem>>, vector<1x16xf32>,
    %247 = vector.extract_strided_slice %200 {offsets = [10, 0], sizes = [1, 16], strides = [1, 1]} : vector<16x16xf32> to vector<1x16xf32>
    %c0_280 = arith.constant 0 : index
    %c160_281 = arith.constant 160 : index
    %248 = vector.load %arg12[%c0_280, %c160_281] : memref<2x256xf32, #tpu.memory_space<vmem>>, vector<1x16xf32>
    tpu.vector_store %arg12[%c0_280, %c160_281], %247 {strides = array<i32>} : memref<2x256xf32, #tpu.memory_space<vmem>>, vector<1x16xf32>,
    %249 = vector.extract_strided_slice %206 {offsets = [10, 0], sizes = [1, 16], strides = [1, 1]} : vector<16x16xf32> to vector<1x16xf32>
    %c1_282 = arith.constant 1 : index
    %c160_283 = arith.constant 160 : index
    %250 = vector.load %arg12[%c1_282, %c160_283] : memref<2x256xf32, #tpu.memory_space<vmem>>, vector<1x16xf32>
    tpu.vector_store %arg12[%c1_282, %c160_283], %249 {strides = array<i32>} : memref<2x256xf32, #tpu.memory_space<vmem>>, vector<1x16xf32>,
    %251 = vector.extract_strided_slice %200 {offsets = [11, 0], sizes = [1, 16], strides = [1, 1]} : vector<16x16xf32> to vector<1x16xf32>
    %c0_284 = arith.constant 0 : index
    %c176_285 = arith.constant 176 : index
    %252 = vector.load %arg12[%c0_284, %c176_285] : memref<2x256xf32, #tpu.memory_space<vmem>>, vector<1x16xf32>
    tpu.vector_store %arg12[%c0_284, %c176_285], %251 {strides = array<i32>} : memref<2x256xf32, #tpu.memory_space<vmem>>, vector<1x16xf32>,
    %253 = vector.extract_strided_slice %206 {offsets = [11, 0], sizes = [1, 16], strides = [1, 1]} : vector<16x16xf32> to vector<1x16xf32>
    %c1_286 = arith.constant 1 : index
    %c176_287 = arith.constant 176 : index
    %254 = vector.load %arg12[%c1_286, %c176_287] : memref<2x256xf32, #tpu.memory_space<vmem>>, vector<1x16xf32>
    tpu.vector_store %arg12[%c1_286, %c176_287], %253 {strides = array<i32>} : memref<2x256xf32, #tpu.memory_space<vmem>>, vector<1x16xf32>,
    %255 = vector.extract_strided_slice %200 {offsets = [12, 0], sizes = [1, 16], strides = [1, 1]} : vector<16x16xf32> to vector<1x16xf32>
    %c0_288 = arith.constant 0 : index
    %c192_289 = arith.constant 192 : index
    %256 = vector.load %arg12[%c0_288, %c192_289] : memref<2x256xf32, #tpu.memory_space<vmem>>, vector<1x16xf32>
    tpu.vector_store %arg12[%c0_288, %c192_289], %255 {strides = array<i32>} : memref<2x256xf32, #tpu.memory_space<vmem>>, vector<1x16xf32>,
    %257 = vector.extract_strided_slice %206 {offsets = [12, 0], sizes = [1, 16], strides = [1, 1]} : vector<16x16xf32> to vector<1x16xf32>
    %c1_290 = arith.constant 1 : index
    %c192_291 = arith.constant 192 : index
    %258 = vector.load %arg12[%c1_290, %c192_291] : memref<2x256xf32, #tpu.memory_space<vmem>>, vector<1x16xf32>
    tpu.vector_store %arg12[%c1_290, %c192_291], %257 {strides = array<i32>} : memref<2x256xf32, #tpu.memory_space<vmem>>, vector<1x16xf32>,
    %259 = vector.extract_strided_slice %200 {offsets = [13, 0], sizes = [1, 16], strides = [1, 1]} : vector<16x16xf32> to vector<1x16xf32>
    %c0_292 = arith.constant 0 : index
    %c208_293 = arith.constant 208 : index
    %260 = vector.load %arg12[%c0_292, %c208_293] : memref<2x256xf32, #tpu.memory_space<vmem>>, vector<1x16xf32>
    tpu.vector_store %arg12[%c0_292, %c208_293], %259 {strides = array<i32>} : memref<2x256xf32, #tpu.memory_space<vmem>>, vector<1x16xf32>,
    %261 = vector.extract_strided_slice %206 {offsets = [13, 0], sizes = [1, 16], strides = [1, 1]} : vector<16x16xf32> to vector<1x16xf32>
    %c1_294 = arith.constant 1 : index
    %c208_295 = arith.constant 208 : index
    %262 = vector.load %arg12[%c1_294, %c208_295] : memref<2x256xf32, #tpu.memory_space<vmem>>, vector<1x16xf32>
    tpu.vector_store %arg12[%c1_294, %c208_295], %261 {strides = array<i32>} : memref<2x256xf32, #tpu.memory_space<vmem>>, vector<1x16xf32>,
    %263 = vector.extract_strided_slice %200 {offsets = [14, 0], sizes = [1, 16], strides = [1, 1]} : vector<16x16xf32> to vector<1x16xf32>
    %c0_296 = arith.constant 0 : index
    %c224_297 = arith.constant 224 : index
    %264 = vector.load %arg12[%c0_296, %c224_297] : memref<2x256xf32, #tpu.memory_space<vmem>>, vector<1x16xf32>
    tpu.vector_store %arg12[%c0_296, %c224_297], %263 {strides = array<i32>} : memref<2x256xf32, #tpu.memory_space<vmem>>, vector<1x16xf32>,
    %265 = vector.extract_strided_slice %206 {offsets = [14, 0], sizes = [1, 16], strides = [1, 1]} : vector<16x16xf32> to vector<1x16xf32>
    %c1_298 = arith.constant 1 : index
    %c224_299 = arith.constant 224 : index
    %266 = vector.load %arg12[%c1_298, %c224_299] : memref<2x256xf32, #tpu.memory_space<vmem>>, vector<1x16xf32>
    tpu.vector_store %arg12[%c1_298, %c224_299], %265 {strides = array<i32>} : memref<2x256xf32, #tpu.memory_space<vmem>>, vector<1x16xf32>,
    %267 = vector.extract_strided_slice %200 {offsets = [15, 0], sizes = [1, 16], strides = [1, 1]} : vector<16x16xf32> to vector<1x16xf32>
    %c0_300 = arith.constant 0 : index
    %c240_301 = arith.constant 240 : index
    %268 = vector.load %arg12[%c0_300, %c240_301] : memref<2x256xf32, #tpu.memory_space<vmem>>, vector<1x16xf32>
    tpu.vector_store %arg12[%c0_300, %c240_301], %267 {strides = array<i32>} : memref<2x256xf32, #tpu.memory_space<vmem>>, vector<1x16xf32>,
    %269 = vector.extract_strided_slice %206 {offsets = [15, 0], sizes = [1, 16], strides = [1, 1]} : vector<16x16xf32> to vector<1x16xf32>
    %c1_302 = arith.constant 1 : index
    %c240_303 = arith.constant 240 : index
    %270 = vector.load %arg12[%c1_302, %c240_303] : memref<2x256xf32, #tpu.memory_space<vmem>>, vector<1x16xf32>
    tpu.vector_store %arg12[%c1_302, %c240_303], %269 {strides = array<i32>} : memref<2x256xf32, #tpu.memory_space<vmem>>, vector<1x16xf32>,
    %c0_304 = arith.constant 0 : index
    %c0_305 = arith.constant 0 : index
    %271 = vector.load %arg12[%c0_304, %c0_305] : memref<2x256xf32, #tpu.memory_space<vmem>>, vector<1x256xf32>
    %c0_306 = arith.constant 0 : index
    %c0_307 = arith.constant 0 : index
    %c0_308 = arith.constant 0 : index
    %272 = vector.load %arg1[%c0_306, %c0_307, %c0_308] : memref<1x8x256xf32, #tpu.memory_space<vmem>>, vector<1x8x256xf32>
    %273 = vector.shape_cast %272 : vector<1x8x256xf32> to vector<8x256xf32>
    %274 = vector.broadcast %271 : vector<1x256xf32> to vector<8x256xf32>
    %275 = arith.mulf %274, %273 : vector<8x256xf32>
    %c0_309 = arith.constant 0 : index
    %c0_310 = arith.constant 0 : index
    %276 = vector.load %arg5[%c0_309, %c0_310] : memref<8x1xf32, #tpu.memory_space<vmem>>, vector<8x1xf32>
    %277 = vector.broadcast %276 : vector<8x1xf32> to vector<8x256xf32>
    %278 = arith.mulf %275, %277 : vector<8x256xf32>
    %c1_311 = arith.constant 1 : index
    %c0_312 = arith.constant 0 : index
    %279 = vector.load %arg12[%c1_311, %c0_312] : memref<2x256xf32, #tpu.memory_space<vmem>>, vector<1x256xf32>
    %c0_313 = arith.constant 0 : index
    %c0_314 = arith.constant 0 : index
    %c0_315 = arith.constant 0 : index
    %280 = vector.load %arg2[%c0_313, %c0_314, %c0_315] : memref<1x8x256xf32, #tpu.memory_space<vmem>>, vector<1x8x256xf32>
    %281 = vector.shape_cast %280 : vector<1x8x256xf32> to vector<8x256xf32>
    %282 = vector.broadcast %279 : vector<1x256xf32> to vector<8x256xf32>
    %283 = arith.mulf %282, %281 : vector<8x256xf32>
    %c0_316 = arith.constant 0 : index
    %c0_317 = arith.constant 0 : index
    %284 = vector.load %arg6[%c0_316, %c0_317] : memref<8x1xf32, #tpu.memory_space<vmem>>, vector<8x1xf32>
    %285 = vector.broadcast %284 : vector<8x1xf32> to vector<8x256xf32>
    %286 = arith.mulf %283, %285 : vector<8x256xf32>
    %287 = arith.addf %278, %286 : vector<8x256xf32>
    %c0_318 = arith.constant 0 : index
    %c0_319 = arith.constant 0 : index
    %c0_320 = arith.constant 0 : index
    %288 = vector.load %arg7[%c0_318, %c0_319, %c0_320] : memref<1x8x256xf32, #tpu.memory_space<vmem>>, vector<1x8x256xf32>
    %289 = vector.shape_cast %288 : vector<1x8x256xf32> to vector<8x256xf32>
    %290 = vector.shape_cast %287 : vector<8x256xf32> to vector<1x8x256xf32>
    tpu.vector_store %arg7[%c0_318, %c0_319, %c0_320], %290 {strides = array<i32>} : memref<1x8x256xf32, #tpu.memory_space<vmem>>, vector<1x8x256xf32>,
    return
  }
  func.func @transform_0(%arg0: i32) -> (i32, i32, i32) {
    %c0_i32 = arith.constant 0 : i32
    %c0_i32_0 = arith.constant 0 : i32
    %c0_i32_1 = arith.constant 0 : i32
    return %arg0, %c0_i32, %c0_i32_0 : i32, i32, i32
  }
  func.func @transform_1(%arg0: i32) -> (i32, i32, i32) {
    %c0_i32 = arith.constant 0 : i32
    %c0_i32_0 = arith.constant 0 : i32
    %c0_i32_1 = arith.constant 0 : i32
    return %arg0, %c0_i32, %c0_i32_0 : i32, i32, i32
  }
  func.func @transform_2(%arg0: i32) -> (i32, i32) {
    %c0_i32 = arith.constant 0 : i32
    %c0_i32_0 = arith.constant 0 : i32
    %c0_i32_1 = arith.constant 0 : i32
    return %c0_i32, %c0_i32_0 : i32, i32
  }
  func.func @transform_3(%arg0: i32) -> (i32, i32) {
    %c0_i32 = arith.constant 0 : i32
    %c0_i32_0 = arith.constant 0 : i32
    %c0_i32_1 = arith.constant 0 : i32
    return %c0_i32, %c0_i32_0 : i32, i32
  }
  func.func @transform_4(%arg0: i32) -> (i32, i32) {
    %c0_i32 = arith.constant 0 : i32
    %c0_i32_0 = arith.constant 0 : i32
    %c0_i32_1 = arith.constant 0 : i32
    return %c0_i32, %c0_i32_0 : i32, i32
  }
  func.func @transform_5(%arg0: i32) -> (i32, i32) {
    %c0_i32 = arith.constant 0 : i32
    %c0_i32_0 = arith.constant 0 : i32
    %c0_i32_1 = arith.constant 0 : i32
    return %c0_i32, %c0_i32_0 : i32, i32
  }
  func.func @transform_6(%arg0: i32) -> (i32, i32, i32) {
    %c0_i32 = arith.constant 0 : i32
    %c0_i32_0 = arith.constant 0 : i32
    %c0_i32_1 = arith.constant 0 : i32
    return %arg0, %c0_i32, %c0_i32_0 : i32, i32, i32
  }
}

</mosaic_0001>

<llo_original>
// kernel: spm_forward.1
$region0: #{spm_forward.1}
  #allocation0 [shape = 'u32[]', space=smem, size = 0x4, offset = 0x4, fixed_abs, tag = 'smem constant byte address 0x4 - core index']
  #allocation1 [shape = 'u32[72,128]{1,0:T(1,128)}', space=vmem, size = 0x9000, scoped, tag = 'internal scratch']
  #allocation2 [shape = 'f32[16,326]{1,0:T(8,128)}', space=vmem, size = 0x6000, scoped, tag = 'scratch operand']
  #allocation3 [shape = 'f32[144,288]{1,0:T(8,128)}', space=vmem, size = 0x36000, scoped, tag = 'scratch operand']
  #allocation4 [shape = 'f32[4,288]{1,0:T(4,128)}', space=vmem, size = 0x1800, scoped, tag = 'scratch operand']
  #allocation5 [shape = 'f32[4,16,16]{2,1,0:T(8,128)}', space=vmem, size = 0x8000, scoped, tag = 'scratch operand']
  #allocation6 [shape = 'f32[2,256]{1,0:T(2,128)}', space=vmem, size = 0x800, scoped, tag = 'scratch operand']
  %s0 = inlined_call_operand.vmem [shape: f32[1,8,256], index: 0, kind: input, shape index: {}]
  %s1 = inlined_call_operand.vmem [shape: f32[1,8,256], index: 1, kind: input, shape index: {}]
  %s2 = inlined_call_operand.vmem [shape: f32[4,144], index: 2, kind: input, shape index: {}]
  %s3 = inlined_call_operand.vmem [shape: f32[4,1], index: 3, kind: input, shape index: {}]
  %s4 = inlined_call_operand.vmem [shape: f32[8,1], index: 4, kind: input, shape index: {}]
  %s5 = inlined_call_operand.vmem [shape: f32[8,1], index: 5, kind: input, shape index: {}]
  %s6 = inlined_call_operand.vmem [shape: f32[1,8,256], index: 6, kind: output, shape index: {}]
  %s7 = sld [smem:[#allocation0]]
  $region34: #{spm_forward.1} parent=0
    _
  %s9 = ssub.s32 1, %s7
  %s10 = scalar_select 0, %s9, %s7
  // Predicated region
  $region2: #{spm_forward.1} parent=0 // pred_check
    _
  $region3: #{spm_forward.1} parent=0 // pred_check_branch
    %12 = sbr.rel (0) target = $region5
  $region4: #{spm_forward.1} parent=0 // pred_region
    _
  $region5: #{spm_forward.1} parent=0 // pred_fallthru
    _
  // Predicated region
  $region6: #{spm_forward.1} parent=0 // pred_check
    _
  $region7: #{spm_forward.1} parent=0 // pred_check_branch
    %14 = sbr.rel (0) target = $region9
  $region8: #{spm_forward.1} parent=0 // pred_region
    _
  $region9: #{spm_forward.1} parent=0 // pred_fallthru
    _
  // Predicated region
  $region10: #{spm_forward.1} parent=0 // pred_check
    _
  $region11: #{spm_forward.1} parent=0 // pred_check_branch
    %16 = sbr.rel (0) target = $region13
  $region12: #{spm_forward.1} parent=0 // pred_region
    _
  $region13: #{spm_forward.1} parent=0 // pred_fallthru
    _
  // Predicated region
  $region14: #{spm_forward.1} parent=0 // pred_check
    _
  $region15: #{spm_forward.1} parent=0 // pred_check_branch
    %18 = sbr.rel (0) target = $region17
  $region16: #{spm_forward.1} parent=0 // pred_region
    _
  $region17: #{spm_forward.1} parent=0 // pred_fallthru
    _
  // Predicated region
  $region18: #{spm_forward.1} parent=0 // pred_check
    _
  $region19: #{spm_forward.1} parent=0 // pred_check_branch
    %20 = sbr.rel (0) target = $region21
  $region20: #{spm_forward.1} parent=0 // pred_region
    _
  $region21: #{spm_forward.1} parent=0 // pred_fallthru
    _
  // Predicated region
  $region22: #{spm_forward.1} parent=0 // pred_check
    _
  $region23: #{spm_forward.1} parent=0 // pred_check_branch
    %22 = sbr.rel (0) target = $region25
  $region24: #{spm_forward.1} parent=0 // pred_region
    _
  $region25: #{spm_forward.1} parent=0 // pred_fallthru
    _
  %23 = vst [vmem:[#allocation2] sm:$0xff] 0.0
  %24 = vst [vmem:[#allocation2 + $0x8] sm:$0xff] 0.0
  %vm25 = vcmask 572416
  %26 = vst.msk [vmem:[#allocation2 + $0x10] sm:$0xff] %vm25, 0.0
  %27 = vst [vmem:[#allocation2 + $0x18] sm:$0xff] 0.0
  %28 = vst [vmem:[#allocation2 + $0x20] sm:$0xff] 0.0
  %29 = vst.msk [vmem:[#allocation2 + $0x28] sm:$0xff] %vm25, 0.0
  %v30 = vld [vmem:[%s0] sm:$0xff]
  %32 = vrot.lane.b32.xlu0 %v30, 20
  %v33 = vpop.permute.xlu0 %32
  %vm35 = vcmask 294048
  %36 = vst.msk [vmem:[#allocation2] sm:$0xff] %vm35, %v33
  %v37 = vld [vmem:[%s1] sm:$0xff]
  %39 = vrot.lane.b32.xlu0 %v37, 20
  %v40 = vpop.permute.xlu0 %39
  %42 = vst.msk [vmem:[#allocation2 + $0x18] sm:$0xff] %vm35, %v40
  %v43 = vld [vmem:[%s0] sm:$0xff]
  %45 = vrot.lane.b32.xlu0 %v43, 22
  %v46 = vpop.permute.xlu0 %45
  %vm48 = vcmask 441648
  %49 = vst.msk [vmem:[#allocation2] sm:$0xff] %vm48, %v46
  %v50 = vld [vmem:[%s1] sm:$0xff]
  %52 = vrot.lane.b32.xlu0 %v50, 22
  %v53 = vpop.permute.xlu0 %52
  %55 = vst.msk [vmem:[#allocation2 + $0x18] sm:$0xff] %vm48, %v53
  %v56 = vld [vmem:[%s0] sm:$0xff]
  %58 = vrot.lane.b32.xlu0 %v56, 24
  %v59 = vpop.permute.xlu0 %58
  %vm61 = vcmask 589248
  %62 = vst.msk [vmem:[#allocation2] sm:$0xff] %vm61, %v59
  %v63 = vld [vmem:[%s1] sm:$0xff]
  %65 = vrot.lane.b32.xlu0 %v63, 24
  %v66 = vpop.permute.xlu0 %65
  %68 = vst.msk [vmem:[#allocation2 + $0x18] sm:$0xff] %vm61, %v66
  %v69 = vld [vmem:[%s0] sm:$0xff]
  %71 = vrot.lane.b32.xlu0 %v69, 26
  %v72 = vpop.permute.xlu0 %71
  %vm74 = vcmask 736848
  %75 = vst.msk [vmem:[#allocation2] sm:$0xff] %vm74, %v72
  %v76 = vld [vmem:[%s1] sm:$0xff]
  %78 = vrot.lane.b32.xlu0 %v76, 26
  %v79 = vpop.permute.xlu0 %78
  %81 = vst.msk [vmem:[#allocation2 + $0x18] sm:$0xff] %vm74, %v79
  %v82 = vld [vmem:[%s0] sm:$0xff]
  %84 = vrot.lane.b32.xlu0 %v82, 28
  %v85 = vpop.permute.xlu0 %84
  %vm87 = vcmask 884448
  %88 = vst.msk [vmem:[#allocation2] sm:$0xff] %vm87, %v85
  %v89 = vld [vmem:[%s1] sm:$0xff]
  %91 = vrot.lane.b32.xlu0 %v89, 28
  %v92 = vpop.permute.xlu0 %91
  %94 = vst.msk [vmem:[#allocation2 + $0x18] sm:$0xff] %vm87, %v92
  %v95 = vld [vmem:[%s0] sm:$0xff]
  %97 = vrot.lane.b32.xlu0 %v95, 30
  %v98 = vpop.permute.xlu0 %97
  %vm100 = vcmask 1032048
  %101 = vst.msk [vmem:[#allocation2] sm:$0xff] %vm100, %v98
  %v102 = vld [vmem:[%s1] sm:$0xff]
  %104 = vrot.lane.b32.xlu0 %v102, 30
  %v105 = vpop.permute.xlu0 %104
  %107 = vst.msk [vmem:[#allocation2 + $0x18] sm:$0xff] %vm100, %v105
  %v108 = vld [vmem:[%s0] sm:$0xff]
  %110 = vrot.lane.b32.xlu0 %v108, 32
  %v111 = vpop.permute.xlu0 %110
  %vm113 = vcmask 130048
  %114 = vst.msk [vmem:[#allocation2 + $0x8] sm:$0xff] %vm113, %v111
  %v115 = vld [vmem:[%s1] sm:$0xff]
  %117 = vrot.lane.b32.xlu0 %v115, 32
  %v118 = vpop.permute.xlu0 %117
  %120 = vst.msk [vmem:[#allocation2 + $0x20] sm:$0xff] %vm113, %v118
  %v121 = vld [vmem:[%s0] sm:$0xff]
  %123 = vrot.lane.b32.xlu0 %v121, 34
  %v124 = vpop.permute.xlu0 %123
  %vm126 = vcmask 277648
  %127 = vst.msk [vmem:[#allocation2 + $0x8] sm:$0xff] %vm126, %v124
  %v128 = vld [vmem:[%s1] sm:$0xff]
  %130 = vrot.lane.b32.xlu0 %v128, 34
  %v131 = vpop.permute.xlu0 %130
  %133 = vst.msk [vmem:[#allocation2 + $0x20] sm:$0xff] %vm126, %v131
  %v134 = vld [vmem:[%s0 + $0x8] sm:$0xff]
  %136 = vrot.lane.b32.xlu0 %v134, 36
  %v137 = vpop.permute.xlu0 %136
  %vm139 = vcmask 425248
  %140 = vst.msk [vmem:[#allocation2 + $0x8] sm:$0xff] %vm139, %v137
  %v141 = vld [vmem:[%s1 + $0x8] sm:$0xff]
  %143 = vrot.lane.b32.xlu0 %v141, 36
  %v144 = vpop.permute.xlu0 %143
  %146 = vst.msk [vmem:[#allocation2 + $0x20] sm:$0xff] %vm139, %v144
  %v147 = vld [vmem:[%s0 + $0x8] sm:$0xff]
  %149 = vrot.lane.b32.xlu0 %v147, 38
  %v150 = vpop.permute.xlu0 %149
  %vm152 = vcmask 572848
  %153 = vst.msk [vmem:[#allocation2 + $0x8] sm:$0xff] %vm152, %v150
  %v154 = vld [vmem:[%s1 + $0x8] sm:$0xff]
  %156 = vrot.lane.b32.xlu0 %v154, 38
  %v157 = vpop.permute.xlu0 %156
  %159 = vst.msk [vmem:[#allocation2 + $0x20] sm:$0xff] %vm152, %v157
  %v160 = vld [vmem:[%s0 + $0x8] sm:$0xff]
  %162 = vrot.lane.b32.xlu0 %v160, 40
  %v163 = vpop.permute.xlu0 %162
  %vm165 = vcmask 720448
  %166 = vst.msk [vmem:[#allocation2 + $0x8] sm:$0xff] %vm165, %v163
  %v167 = vld [vmem:[%s1 + $0x8] sm:$0xff]
  %169 = vrot.lane.b32.xlu0 %v167, 40
  %v170 = vpop.permute.xlu0 %169
  %172 = vst.msk [vmem:[#allocation2 + $0x20] sm:$0xff] %vm165, %v170
  %v173 = vld [vmem:[%s0 + $0x8] sm:$0xff]
  %175 = vrot.lane.b32.xlu0 %v173, 42
  %v176 = vpop.permute.xlu0 %175
  %vm178 = vcmask 868048
  %179 = vst.msk [vmem:[#allocation2 + $0x8] sm:$0xff] %vm178, %v176
  %v180 = vld [vmem:[%s1 + $0x8] sm:$0xff]
  %182 = vrot.lane.b32.xlu0 %v180, 42
  %v183 = vpop.permute.xlu0 %182
  %185 = vst.msk [vmem:[#allocation2 + $0x20] sm:$0xff] %vm178, %v183
  %v186 = vld [vmem:[%s0 + $0x8] sm:$0xff]
  %188 = vrot.lane.b32.xlu0 %v186, 44
  %v189 = vpop.permute.xlu0 %188
  %vm191 = vcmask 1015648
  %192 = vst.msk [vmem:[#allocation2 + $0x8] sm:$0xff] %vm191, %v189
  %v193 = vld [vmem:[%s1 + $0x8] sm:$0xff]
  %195 = vrot.lane.b32.xlu0 %v193, 44
  %v196 = vpop.permute.xlu0 %195
  %198 = vst.msk [vmem:[#allocation2 + $0x20] sm:$0xff] %vm191, %v196
  %v199 = vld [vmem:[%s0 + $0x8] sm:$0xff]
  %201 = vrot.lane.b32.xlu0 %v199, 46
  %v202 = vpop.permute.xlu0 %201
  %vm204 = vcmask 1048560
  %205 = vst.msk [vmem:[#allocation2 + $0x8] sm:$0xff] %vm204, %v202
  %vm206 = vcmask 113664
  %207 = vst.msk [vmem:[#allocation2 + $0x10] sm:$0xff] %vm206, %v202
  %v208 = vld [vmem:[%s1 + $0x8] sm:$0xff]
  %210 = vrot.lane.b32.xlu0 %v208, 46
  %v211 = vpop.permute.xlu0 %210
  %213 = vst.msk [vmem:[#allocation2 + $0x20] sm:$0xff] %vm204, %v211
  %214 = vst.msk [vmem:[#allocation2 + $0x28] sm:$0xff] %vm206, %v211
  %v215 = vld [vmem:[%s0 + $0x8] sm:$0xff]
  %217 = vrot.lane.b32.xlu0 %v215, 48
  %v218 = vpop.permute.xlu0 %217
  %vm220 = vcmask 261248
  %221 = vst.msk [vmem:[#allocation2 + $0x10] sm:$0xff] %vm220, %v218
  %v222 = vld [vmem:[%s1 + $0x8] sm:$0xff]
  %224 = vrot.lane.b32.xlu0 %v222, 48
  %v225 = vpop.permute.xlu0 %224
  %227 = vst.msk [vmem:[#allocation2 + $0x28] sm:$0xff] %vm220, %v225
  %v228 = vld [vmem:[%s0 + $0x8] sm:$0xff]
  %230 = vrot.lane.b32.xlu0 %v228, 50
  %v231 = vpop.permute.xlu0 %230
  %vm233 = vcmask 408848
  %234 = vst.msk [vmem:[#allocation2 + $0x10] sm:$0xff] %vm233, %v231
  %v235 = vld [vmem:[%s1 + $0x8] sm:$0xff]
  %237 = vrot.lane.b32.xlu0 %v235, 50
  %v238 = vpop.permute.xlu0 %237
  %240 = vst.msk [vmem:[#allocation2 + $0x28] sm:$0xff] %vm233, %v238
  %v241 = vld [vmem:[#allocation2] sm:$0xff]
  %v242 = vld [vmem:[#allocation2 + $0x8] sm:$0xff]
  %v243 = vld [vmem:[#allocation2 + $0x10] sm:$0xff]
  %v244 = vld [vmem:[#allocation2 + $0x18] sm:$0xff]
  %v245 = vld [vmem:[#allocation2 + $0x20] sm:$0xff]
  %v246 = vld [vmem:[#allocation2 + $0x28] sm:$0xff]
  %247 = vst [vmem:[#allocation3] sm:$0xff] %v241
  %248 = vst [vmem:[#allocation3 + $0x8] sm:$0xff] %v242
  %vm249 = vcmask 261120
  %250 = vst.msk [vmem:[#allocation3 + $0x10] sm:$0xff] %vm249, %v243
  %251 = vst [vmem:[#allocation3 + $0x18] sm:$0xff] %v244
  %252 = vst [vmem:[#allocation3 + $0x20] sm:$0xff] %v245
  %253 = vst.msk [vmem:[#allocation3 + $0x28] sm:$0xff] %vm249, %v246
  %v254 = vld [vmem:[#allocation2] sm:$0xff]
  %v255 = vld [vmem:[#allocation2 + $0x8] sm:$0xff]
  %v256 = vld [vmem:[#allocation2 + $0x10] sm:$0xff]
  %v257 = vld [vmem:[#allocation2 + $0x18] sm:$0xff]
  %v258 = vld [vmem:[#allocation2 + $0x20] sm:$0xff]
  %v259 = vld [vmem:[#allocation2 + $0x28] sm:$0xff]
  %266 = vrot.lane.b32.xlu0 %v254, 127
  %v267 = vpop.permute.xlu0 %266
  %268 = vrot.lane.b32.xlu0 %v255, 127
  %v269 = vpop.permute.xlu0 %268
  %270 = vrot.lane.b32.xlu0 %v256, 127
  %v271 = vpop.permute.xlu0 %270
  %272 = vrot.lane.b32.xlu0 %v257, 127
  %v273 = vpop.permute.xlu0 %272
  %274 = vrot.lane.b32.xlu0 %v258, 127
  %v275 = vpop.permute.xlu0 %274
  %276 = vrot.lane.b32.xlu0 %v259, 127
  %v277 = vpop.permute.xlu0 %276
  %vm278 = vcmask 1039360
  %v279 = vsel %vm278, %v267, %v269
  %v280 = vsel %vm278, %v269, %v271
  %v281 = vsel %vm278, %v273, %v275
  %v282 = vsel %vm278, %v275, %v277
  %289 = vst [vmem:[#allocation3 + $0x30] sm:$0xff] %v279
  %290 = vst [vmem:[#allocation3 + $0x38] sm:$0xff] %v280
  %291 = vst.msk [vmem:[#allocation3 + $0x40] sm:$0xff] %vm249, %v271
  %292 = vst [vmem:[#allocation3 + $0x48] sm:$0xff] %v281
  %293 = vst [vmem:[#allocation3 + $0x50] sm:$0xff] %v282
  %294 = vst.msk [vmem:[#allocation3 + $0x58] sm:$0xff] %vm249, %v277
  %v295 = vld [vmem:[#allocation2] sm:$0xff]
  %v296 = vld [vmem:[#allocation2 + $0x8] sm:$0xff]
  %v297 = vld [vmem:[#allocation2 + $0x10] sm:$0xff]
  %v298 = vld [vmem:[#allocation2 + $0x18] sm:$0xff]
  %v299 = vld [vmem:[#allocation2 + $0x20] sm:$0xff]
  %v300 = vld [vmem:[#allocation2 + $0x28] sm:$0xff]
  %307 = vrot.lane.b32.xlu0 %v295, 126
  %v308 = vpop.permute.xlu0 %307
  %309 = vrot.lane.b32.xlu0 %v296, 126
  %v310 = vpop.permute.xlu0 %309
  %311 = vrot.lane.b32.xlu0 %v297, 126
  %v312 = vpop.permute.xlu0 %311
  %313 = vrot.lane.b32.xlu0 %v298, 126
  %v314 = vpop.permute.xlu0 %313
  %315 = vrot.lane.b32.xlu0 %v299, 126
  %v316 = vpop.permute.xlu0 %315
  %317 = vrot.lane.b32.xlu0 %v300, 126
  %v318 = vpop.permute.xlu0 %317
  %vm319 = vcmask 1031168
  %v320 = vsel %vm319, %v308, %v310
  %v321 = vsel %vm319, %v310, %v312
  %v322 = vsel %vm319, %v314, %v316
  %v323 = vsel %vm319, %v316, %v318
  %330 = vst [vmem:[#allocation3 + $0x60] sm:$0xff] %v320
  %331 = vst [vmem:[#allocation3 + $0x68] sm:$0xff] %v321
  %332 = vst.msk [vmem:[#allocation3 + $0x70] sm:$0xff] %vm249, %v312
  %333 = vst [vmem:[#allocation3 + $0x78] sm:$0xff] %v322
  %334 = vst [vmem:[#allocation3 + $0x80] sm:$0xff] %v323
  %335 = vst.msk [vmem:[#allocation3 + $0x88] sm:$0xff] %vm249, %v318
  %v336 = vld [vmem:[#allocation2] sm:$0xff]
  %v337 = vld [vmem:[#allocation2 + $0x8] sm:$0xff]
  %v338 = vld [vmem:[#allocation2 + $0x10] sm:$0xff]
  %v339 = vld [vmem:[#allocation2 + $0x18] sm:$0xff]
  %v340 = vld [vmem:[#allocation2 + $0x20] sm:$0xff]
  %v341 = vld [vmem:[#allocation2 + $0x28] sm:$0xff]
  %348 = vrot.lane.b32.xlu0 %v336, 110
  %v349 = vpop.permute.xlu0 %348
  %350 = vrot.lane.b32.xlu0 %v337, 110
  %v351 = vpop.permute.xlu0 %350
  %352 = vrot.lane.b32.xlu0 %v338, 110
  %v353 = vpop.permute.xlu0 %352
  %354 = vrot.lane.b32.xlu0 %v339, 110
  %v355 = vpop.permute.xlu0 %354
  %356 = vrot.lane.b32.xlu0 %v340, 110
  %v357 = vpop.permute.xlu0 %356
  %358 = vrot.lane.b32.xlu0 %v341, 110
  %v359 = vpop.permute.xlu0 %358
  %vm360 = vcmask 900096
  %v361 = vsel %vm360, %v349, %v351
  %v362 = vsel %vm360, %v351, %v353
  %v363 = vsel %vm360, %v355, %v357
  %v364 = vsel %vm360, %v357, %v359
  %371 = vst [vmem:[#allocation3 + $0x90] sm:$0xff] %v361
  %372 = vst [vmem:[#allocation3 + $0x98] sm:$0xff] %v362
  %373 = vst.msk [vmem:[#allocation3 + $0xa0] sm:$0xff] %vm249, %v353
  %374 = vst [vmem:[#allocation3 + $0xa8] sm:$0xff] %v363
  %375 = vst [vmem:[#allocation3 + $0xb0] sm:$0xff] %v364
  %376 = vst.msk [vmem:[#allocation3 + $0xb8] sm:$0xff] %vm249, %v359
  %v377 = vld [vmem:[#allocation2] sm:$0xff]
  %v378 = vld [vmem:[#allocation2 + $0x8] sm:$0xff]
  %v379 = vld [vmem:[#allocation2 + $0x10] sm:$0xff]
  %v380 = vld [vmem:[#allocation2 + $0x18] sm:$0xff]
  %v381 = vld [vmem:[#allocation2 + $0x20] sm:$0xff]
  %v382 = vld [vmem:[#allocation2 + $0x28] sm:$0xff]
  %389 = vrot.lane.b32.xlu0 %v377, 109
  %v390 = vpop.permute.xlu0 %389
  %391 = vrot.lane.b32.xlu0 %v378, 109
  %v392 = vpop.permute.xlu0 %391
  %393 = vrot.lane.b32.xlu0 %v379, 109
  %v394 = vpop.permute.xlu0 %393
  %395 = vrot.lane.b32.xlu0 %v380, 109
  %v396 = vpop.permute.xlu0 %395
  %397 = vrot.lane.b32.xlu0 %v381, 109
  %v398 = vpop.permute.xlu0 %397
  %399 = vrot.lane.b32.xlu0 %v382, 109
  %v400 = vpop.permute.xlu0 %399
  %vm401 = vcmask 891904
  %v402 = vsel %vm401, %v390, %v392
  %v403 = vsel %vm401, %v392, %v394
  %v404 = vsel %vm401, %v396, %v398
  %v405 = vsel %vm401, %v398, %v400
  %412 = vst [vmem:[#allocation3 + $0xc0] sm:$0xff] %v402
  %413 = vst [vmem:[#allocation3 + $0xc8] sm:$0xff] %v403
  %414 = vst.msk [vmem:[#allocation3 + $0xd0] sm:$0xff] %vm249, %v394
  %415 = vst [vmem:[#allocation3 + $0xd8] sm:$0xff] %v404
  %416 = vst [vmem:[#allocation3 + $0xe0] sm:$0xff] %v405
  %417 = vst.msk [vmem:[#allocation3 + $0xe8] sm:$0xff] %vm249, %v400
  %v418 = vld [vmem:[#allocation2] sm:$0xff]
  %v419 = vld [vmem:[#allocation2 + $0x8] sm:$0xff]
  %v420 = vld [vmem:[#allocation2 + $0x10] sm:$0xff]
  %v421 = vld [vmem:[#allocation2 + $0x18] sm:$0xff]
  %v422 = vld [vmem:[#allocation2 + $0x20] sm:$0xff]
  %v423 = vld [vmem:[#allocation2 + $0x28] sm:$0xff]
  %430 = vrot.lane.b32.xlu0 %v418, 108
  %v431 = vpop.permute.xlu0 %430
  %432 = vrot.lane.b32.xlu0 %v419, 108
  %v433 = vpop.permute.xlu0 %432
  %434 = vrot.lane.b32.xlu0 %v420, 108
  %v435 = vpop.permute.xlu0 %434
  %436 = vrot.lane.b32.xlu0 %v421, 108
  %v437 = vpop.permute.xlu0 %436
  %438 = vrot.lane.b32.xlu0 %v422, 108
  %v439 = vpop.permute.xlu0 %438
  %440 = vrot.lane.b32.xlu0 %v423, 108
  %v441 = vpop.permute.xlu0 %440
  %vm442 = vcmask 883712
  %v443 = vsel %vm442, %v431, %v433
  %v444 = vsel %vm442, %v433, %v435
  %v445 = vsel %vm442, %v437, %v439
  %v446 = vsel %vm442, %v439, %v441
  %453 = vst [vmem:[#allocation3 + $0xf0] sm:$0xff] %v443
  %454 = vst [vmem:[#allocation3 + $0xf8] sm:$0xff] %v444
  %455 = vst.msk [vmem:[#allocation3 + $0x100] sm:$0xff] %vm249, %v435
  %456 = vst [vmem:[#allocation3 + $0x108] sm:$0xff] %v445
  %457 = vst [vmem:[#allocation3 + $0x110] sm:$0xff] %v446
  %458 = vst.msk [vmem:[#allocation3 + $0x118] sm:$0xff] %vm249, %v441
  %v459 = vld [vmem:[#allocation2] sm:$0xff]
  %v460 = vld [vmem:[#allocation2 + $0x8] sm:$0xff]
  %v461 = vld [vmem:[#allocation2 + $0x10] sm:$0xff]
  %v462 = vld [vmem:[#allocation2 + $0x18] sm:$0xff]
  %v463 = vld [vmem:[#allocation2 + $0x20] sm:$0xff]
  %v464 = vld [vmem:[#allocation2 + $0x28] sm:$0xff]
  %471 = vrot.lane.b32.xlu0 %v459, 92
  %v472 = vpop.permute.xlu0 %471
  %473 = vrot.lane.b32.xlu0 %v460, 92
  %v474 = vpop.permute.xlu0 %473
  %475 = vrot.lane.b32.xlu0 %v461, 92
  %v476 = vpop.permute.xlu0 %475
  %477 = vrot.lane.b32.xlu0 %v462, 92
  %v478 = vpop.permute.xlu0 %477
  %479 = vrot.lane.b32.xlu0 %v463, 92
  %v480 = vpop.permute.xlu0 %479
  %481 = vrot.lane.b32.xlu0 %v464, 92
  %v482 = vpop.permute.xlu0 %481
  %vm483 = vcmask 752640
  %v484 = vsel %vm483, %v472, %v474
  %v485 = vsel %vm483, %v474, %v476
  %v486 = vsel %vm483, %v478, %v480
  %v487 = vsel %vm483, %v480, %v482
  %494 = vst [vmem:[#allocation3 + $0x120] sm:$0xff] %v484
  %495 = vst [vmem:[#allocation3 + $0x128] sm:$0xff] %v485
  %496 = vst.msk [vmem:[#allocation3 + $0x130] sm:$0xff] %vm249, %v476
  %497 = vst [vmem:[#allocation3 + $0x138] sm:$0xff] %v486
  %498 = vst [vmem:[#allocation3 + $0x140] sm:$0xff] %v487
  %499 = vst.msk [vmem:[#allocation3 + $0x148] sm:$0xff] %vm249, %v482
  %v500 = vld [vmem:[#allocation2] sm:$0xff]
  %v501 = vld [vmem:[#allocation2 + $0x8] sm:$0xff]
  %v502 = vld [vmem:[#allocation2 + $0x10] sm:$0xff]
  %v503 = vld [vmem:[#allocation2 + $0x18] sm:$0xff]
  %v504 = vld [vmem:[#allocation2 + $0x20] sm:$0xff]
  %v505 = vld [vmem:[#allocation2 + $0x28] sm:$0xff]
  %512 = vrot.lane.b32.xlu0 %v500, 91
  %v513 = vpop.permute.xlu0 %512
  %514 = vrot.lane.b32.xlu0 %v501, 91
  %v515 = vpop.permute.xlu0 %514
  %516 = vrot.lane.b32.xlu0 %v502, 91
  %v517 = vpop.permute.xlu0 %516
  %518 = vrot.lane.b32.xlu0 %v503, 91
  %v519 = vpop.permute.xlu0 %518
  %520 = vrot.lane.b32.xlu0 %v504, 91
  %v521 = vpop.permute.xlu0 %520
  %522 = vrot.lane.b32.xlu0 %v505, 91
  %v523 = vpop.permute.xlu0 %522
  %vm524 = vcmask 744448
  %v525 = vsel %vm524, %v513, %v515
  %v526 = vsel %vm524, %v515, %v517
  %v527 = vsel %vm524, %v519, %v521
  %v528 = vsel %vm524, %v521, %v523
  %535 = vst [vmem:[#allocation3 + $0x150] sm:$0xff] %v525
  %536 = vst [vmem:[#allocation3 + $0x158] sm:$0xff] %v526
  %537 = vst.msk [vmem:[#allocation3 + $0x160] sm:$0xff] %vm249, %v517
  %538 = vst [vmem:[#allocation3 + $0x168] sm:$0xff] %v527
  %539 = vst [vmem:[#allocation3 + $0x170] sm:$0xff] %v528
  %540 = vst.msk [vmem:[#allocation3 + $0x178] sm:$0xff] %vm249, %v523
  %v541 = vld [vmem:[#allocation2] sm:$0xff]
  %v542 = vld [vmem:[#allocation2 + $0x8] sm:$0xff]
  %v543 = vld [vmem:[#allocation2 + $0x10] sm:$0xff]
  %v544 = vld [vmem:[#allocation2 + $0x18] sm:$0xff]
  %v545 = vld [vmem:[#allocation2 + $0x20] sm:$0xff]
  %v546 = vld [vmem:[#allocation2 + $0x28] sm:$0xff]
  %553 = vrot.lane.b32.xlu0 %v541, 90
  %v554 = vpop.permute.xlu0 %553
  %555 = vrot.lane.b32.xlu0 %v542, 90
  %v556 = vpop.permute.xlu0 %555
  %557 = vrot.lane.b32.xlu0 %v543, 90
  %v558 = vpop.permute.xlu0 %557
  %559 = vrot.lane.b32.xlu0 %v544, 90
  %v560 = vpop.permute.xlu0 %559
  %561 = vrot.lane.b32.xlu0 %v545, 90
  %v562 = vpop.permute.xlu0 %561
  %563 = vrot.lane.b32.xlu0 %v546, 90
  %v564 = vpop.permute.xlu0 %563
  %vm565 = vcmask 736256
  %v566 = vsel %vm565, %v554, %v556
  %v567 = vsel %vm565, %v556, %v558
  %v568 = vsel %vm565, %v560, %v562
  %v569 = vsel %vm565, %v562, %v564
  %576 = vst [vmem:[#allocation3 + $0x180] sm:$0xff] %v566
  %577 = vst [vmem:[#allocation3 + $0x188] sm:$0xff] %v567
  %578 = vst.msk [vmem:[#allocation3 + $0x190] sm:$0xff] %vm249, %v558
  %579 = vst [vmem:[#allocation3 + $0x198] sm:$0xff] %v568
  %580 = vst [vmem:[#allocation3 + $0x1a0] sm:$0xff] %v569
  %581 = vst.msk [vmem:[#allocation3 + $0x1a8] sm:$0xff] %vm249, %v564
  %v582 = vld [vmem:[%s2] sm:$0xff]
  %v583 = vld [vmem:[#allocation3] sm:$0xff]
  %v584 = vld [vmem:[#allocation3 + $0x8] sm:$0xff]
  %v585 = vld [vmem:[#allocation3 + $0x10] sm:$0xff]
  %v586 = vld [vmem:[#allocation3 + $0x18] sm:$0xff]
  %v587 = vld [vmem:[#allocation3 + $0x20] sm:$0xff]
  %v588 = vld [vmem:[#allocation3 + $0x28] sm:$0xff]
  %v589 = vld [vmem:[#allocation3 + $0x30] sm:$0xff]
  %v590 = vld [vmem:[#allocation3 + $0x38] sm:$0xff]
  %v591 = vld [vmem:[#allocation3 + $0x40] sm:$0xff]
  %v592 = vld [vmem:[#allocation3 + $0x48] sm:$0xff]
  %v593 = vld [vmem:[#allocation3 + $0x50] sm:$0xff]
  %v594 = vld [vmem:[#allocation3 + $0x58] sm:$0xff]
  %v595 = vld [vmem:[#allocation3 + $0x60] sm:$0xff]
  %v596 = vld [vmem:[#allocation3 + $0x68] sm:$0xff]
  %v597 = vld [vmem:[#allocation3 + $0x70] sm:$0xff]
  %v598 = vld [vmem:[#allocation3 + $0x78] sm:$0xff]
  %v599 = vld [vmem:[#allocation3 + $0x80] sm:$0xff]
  %v600 = vld [vmem:[#allocation3 + $0x88] sm:$0xff]
  %v601 = vld [vmem:[#allocation3 + $0x90] sm:$0xff]
  %v602 = vld [vmem:[#allocation3 + $0x98] sm:$0xff]
  %v603 = vld [vmem:[#allocation3 + $0xa0] sm:$0xff]
  %v604 = vld [vmem:[#allocation3 + $0xa8] sm:$0xff]
  %v605 = vld [vmem:[#allocation3 + $0xb0] sm:$0xff]
  %v606 = vld [vmem:[#allocation3 + $0xb8] sm:$0xff]
  %v607 = vld [vmem:[#allocation3 + $0xc0] sm:$0xff]
  %v608 = vld [vmem:[#allocation3 + $0xc8] sm:$0xff]
  %v609 = vld [vmem:[#allocation3 + $0xd0] sm:$0xff]
  %v610 = vld [vmem:[#allocation3 + $0xd8] sm:$0xff]
  %v611 = vld [vmem:[#allocation3 + $0xe0] sm:$0xff]
  %v612 = vld [vmem:[#allocation3 + $0xe8] sm:$0xff]
  %v613 = vld [vmem:[#allocation3 + $0xf0] sm:$0xff]
  %v614 = vld [vmem:[#allocation3 + $0xf8] sm:$0xff]
  %v615 = vld [vmem:[#allocation3 + $0x100] sm:$0xff]
  %v616 = vld [vmem:[#allocation3 + $0x108] sm:$0xff]
  %v617 = vld [vmem:[#allocation3 + $0x110] sm:$0xff]
  %v618 = vld [vmem:[#allocation3 + $0x118] sm:$0xff]
  %v619 = vld [vmem:[#allocation3 + $0x120] sm:$0xff]
  %v620 = vld [vmem:[#allocation3 + $0x128] sm:$0xff]
  %v621 = vld [vmem:[#allocation3 + $0x130] sm:$0xff]
  %v622 = vld [vmem:[#allocation3 + $0x138] sm:$0xff]
  %v623 = vld [vmem:[#allocation3 + $0x140] sm:$0xff]
  %v624 = vld [vmem:[#allocation3 + $0x148] sm:$0xff]
  %v625 = vld [vmem:[#allocation3 + $0x150] sm:$0xff]
  %v626 = vld [vmem:[#allocation3 + $0x158] sm:$0xff]
  %v627 = vld [vmem:[#allocation3 + $0x160] sm:$0xff]
  %v628 = vld [vmem:[#allocation3 + $0x168] sm:$0xff]
  %v629 = vld [vmem:[#allocation3 + $0x170] sm:$0xff]
  %v630 = vld [vmem:[#allocation3 + $0x178] sm:$0xff]
  %v631 = vld [vmem:[#allocation3 + $0x180] sm:$0xff]
  %v632 = vld [vmem:[#allocation3 + $0x188] sm:$0xff]
  %v633 = vld [vmem:[#allocation3 + $0x190] sm:$0xff]
  %v634 = vld [vmem:[#allocation3 + $0x198] sm:$0xff]
  %v635 = vld [vmem:[#allocation3 + $0x1a0] sm:$0xff]
  %v636 = vld [vmem:[#allocation3 + $0x1a8] sm:$0xff]
  %v637 = vld [vmem:[%s3] sm:$0xf]
  %639 = vset.pattern.permute.xlu0 0
  %640 = vperm.xlu0 %639, %v637
  %v641 = vpop.permute.xlu0 %640
  %644 = vst [vmem:[#allocation1] ss:$2 sm:$0xff] %v582
  %v645 = vld.sshfl [vmem:[#allocation1] sm:$0xff pattern:$0x75316420]
  %v646 = vld.sshfl [vmem:[#allocation1 + $0x8] sm:$0xff pattern:$0x75316420]
  %v648 = vsel %vm113, %v646, 0
  %650 = vmatpush.msra.mxu0 %v628
  %651 = vmatpush.msra.mxu0 %v625
  %652 = vmatpush.msra.mxu0 %v622
  %653 = vmatpush.msra.mxu0 %v619
  %654 = vmatpush.msra.mxu0 %v616
  %655 = vmatpush.msra.mxu0 %v613
  %656 = vmatpush.msra.mxu0 %v610
  %657 = vmatpush.msra.mxu0 %v607
  %658 = vmatpush.msra.mxu0 %v604
  %659 = vmatpush.msra.mxu0 %v601
  %660 = vmatpush.msra.mxu0 %v598
  %661 = vmatpush.msra.mxu0 %v595
  %662 = vmatpush.msra.mxu0 %v592
  %663 = vmatpush.msra.mxu0 %v589
  %664 = vmatpush.msra.mxu0 %v586
  %665 = vmatpush.msra.mxu0 %v583
  %666 = vmatmul.f32.gmra.mxu0 %v645
  %v667 = vpop.f32.mrf.mxu0
  %v668 = vadd.f32 %v641, %v667
  %669 = vdwg.mxu0
  %670 = vmatpush.msra.mxu0 0.0
  %671 = vmatpush.msra.mxu0 0.0
  %672 = vmatpush.msra.mxu0 0.0
  %673 = vmatpush.msra.mxu0 0.0
  %674 = vmatpush.msra.mxu0 0.0
  %675 = vmatpush.msra.mxu0 0.0
  %676 = vmatpush.msra.mxu0 0.0
  %677 = vmatpush.msra.mxu0 0.0
  %678 = vmatpush.msra.mxu0 0.0
  %679 = vmatpush.msra.mxu0 0.0
  %680 = vmatpush.msra.mxu0 0.0
  %681 = vmatpush.msra.mxu0 0.0
  %682 = vmatpush.msra.mxu0 0.0
  %683 = vmatpush.msra.mxu0 0.0
  %684 = vmatpush.msra.mxu0 %v634
  %685 = vmatpush.msra.mxu0 %v631
  %686 = vmatmul.f32.gmra.mxu0 %v648
  %v687 = vpop.f32.mrf.mxu0
  %v688 = vadd.f32 %v668, %v687
  %689 = vdwg.mxu0
  %690 = vmatpush.msra.mxu0 %v629
  %691 = vmatpush.msra.mxu0 %v626
  %692 = vmatpush.msra.mxu0 %v623
  %693 = vmatpush.msra.mxu0 %v620
  %694 = vmatpush.msra.mxu0 %v617
  %695 = vmatpush.msra.mxu0 %v614
  %696 = vmatpush.msra.mxu0 %v611
  %697 = vmatpush.msra.mxu0 %v608
  %698 = vmatpush.msra.mxu0 %v605
  %699 = vmatpush.msra.mxu0 %v602
  %700 = vmatpush.msra.mxu0 %v599
  %701 = vmatpush.msra.mxu0 %v596
  %702 = vmatpush.msra.mxu0 %v593
  %703 = vmatpush.msra.mxu0 %v590
  %704 = vmatpush.msra.mxu0 %v587
  %705 = vmatpush.msra.mxu0 %v584
  %706 = vmatmul.f32.gmra.mxu0 %v645
  %v707 = vpop.f32.mrf.mxu0
  %v708 = vadd.f32 %v641, %v707
  %709 = vdwg.mxu0
  %710 = vmatpush.msra.mxu0 0.0
  %711 = vmatpush.msra.mxu0 0.0
  %712 = vmatpush.msra.mxu0 0.0
  %713 = vmatpush.msra.mxu0 0.0
  %714 = vmatpush.msra.mxu0 0.0
  %715 = vmatpush.msra.mxu0 0.0
  %716 = vmatpush.msra.mxu0 0.0
  %717 = vmatpush.msra.mxu0 0.0
  %718 = vmatpush.msra.mxu0 0.0
  %719 = vmatpush.msra.mxu0 0.0
  %720 = vmatpush.msra.mxu0 0.0
  %721 = vmatpush.msra.mxu0 0.0
  %722 = vmatpush.msra.mxu0 0.0
  %723 = vmatpush.msra.mxu0 0.0
  %724 = vmatpush.msra.mxu0 %v635
  %725 = vmatpush.msra.mxu0 %v632
  %726 = vmatmul.f32.gmra.mxu0 %v648
  %v727 = vpop.f32.mrf.mxu0
  %v728 = vadd.f32 %v708, %v727
  %729 = vdwg.mxu0
  %730 = vmatpush.msra.mxu0 %v630
  %731 = vmatpush.msra.mxu0 %v627
  %732 = vmatpush.msra.mxu0 %v624
  %733 = vmatpush.msra.mxu0 %v621
  %734 = vmatpush.msra.mxu0 %v618
  %735 = vmatpush.msra.mxu0 %v615
  %736 = vmatpush.msra.mxu0 %v612
  %737 = vmatpush.msra.mxu0 %v609
  %738 = vmatpush.msra.mxu0 %v606
  %739 = vmatpush.msra.mxu0 %v603
  %740 = vmatpush.msra.mxu0 %v600
  %741 = vmatpush.msra.mxu0 %v597
  %742 = vmatpush.msra.mxu0 %v594
  %743 = vmatpush.msra.mxu0 %v591
  %744 = vmatpush.msra.mxu0 %v588
  %745 = vmatpush.msra.mxu0 %v585
  %746 = vmatmul.f32.gmra.mxu0 %v645
  %v747 = vpop.f32.mrf.mxu0
  %v748 = vadd.f32 %v641, %v747
  %749 = vdwg.mxu0
  %750 = vmatpush.msra.mxu0 0.0
  %751 = vmatpush.msra.mxu0 0.0
  %752 = vmatpush.msra.mxu0 0.0
  %753 = vmatpush.msra.mxu0 0.0
  %754 = vmatpush.msra.mxu0 0.0
  %755 = vmatpush.msra.mxu0 0.0
  %756 = vmatpush.msra.mxu0 0.0
  %757 = vmatpush.msra.mxu0 0.0
  %758 = vmatpush.msra.mxu0 0.0
  %759 = vmatpush.msra.mxu0 0.0
  %760 = vmatpush.msra.mxu0 0.0
  %761 = vmatpush.msra.mxu0 0.0
  %762 = vmatpush.msra.mxu0 0.0
  %763 = vmatpush.msra.mxu0 0.0
  %764 = vmatpush.msra.mxu0 %v636
  %765 = vmatpush.msra.mxu0 %v633
  %766 = vmatmul.f32.gmra.mxu0 %v648
  %v767 = vpop.f32.mrf.mxu0
  %v768 = vadd.f32 %v748, %v767
  %769 = vdwg.mxu0
  %v772 = vrot.slane %v728, 4
  %vm773 = vcmask 1043456
  %v774 = vsel %vm773, %v688, %v772
  %776 = vst [vmem:[#allocation4] sm:$0xff] %v774
  %vm777 = vcmask 257024
  %778 = vst.msk [vmem:[#allocation4 + $0x8] sm:$0xf] %vm777, %v768
  %v779 = vld [vmem:[#allocation4] sm:$0xf]
  %v781 = vrot.slane %v779, 3
  %vm782 = vcmask 1040384
  %v783 = vsel %vm782, %v779, %v781
  %vm784 = vcmask 1041409
  %v785 = vsel %vm784, %v779, %v781
  %v786 = vrot.slane %v785, 1
  %vm787 = vcmask 1042434
  %v788 = vsel %vm787, %v779, %v781
  %v789 = vrot.slane %v788, 2
  %vm790 = vcmask 1043459
  %v791 = vsel %vm790, %v779, %v781
  %v792 = vrot.slane %v791, 3
  %v793 = vperm.slane %v783, 0
  %v794 = vperm.slane %v786, 0
  %v795 = vperm.slane %v789, 0
  %v796 = vperm.slane %v792, 0
  %797 = vrot.lane.b32.xlu0 %v793, 127
  %v798 = vpop.permute.xlu0 %797
  %799 = vrot.lane.b32.xlu0 %v794, 127
  %v800 = vpop.permute.xlu0 %799
  %801 = vrot.lane.b32.xlu0 %v795, 127
  %v802 = vpop.permute.xlu0 %801
  %803 = vrot.lane.b32.xlu0 %v796, 127
  %v804 = vpop.permute.xlu0 %803
  %vm809 = vcmask 122880
  %810 = vst.msk [vmem:[#allocation5] sm:$0x1] %vm809, %v798
  %811 = vst.msk [vmem:[#allocation5 + $0x10] sm:$0x1] %vm809, %v800
  %812 = vst.msk [vmem:[#allocation5 + $0x20] sm:$0x1] %vm809, %v802
  %813 = vst.msk [vmem:[#allocation5 + $0x30] sm:$0x1] %vm809, %v804
  %v814 = vld [vmem:[#allocation4] sm:$0xf]
  %v816 = vrot.slane %v814, 3
  %v817 = vsel %vm782, %v814, %v816
  %v818 = vsel %vm784, %v814, %v816
  %v819 = vrot.slane %v818, 1
  %v820 = vsel %vm787, %v814, %v816
  %v821 = vrot.slane %v820, 2
  %v822 = vsel %vm790, %v814, %v816
  %v823 = vrot.slane %v822, 3
  %v824 = vperm.slane %v817, 0
  %v825 = vperm.slane %v819, 0
  %v826 = vperm.slane %v821, 0
  %v827 = vperm.slane %v823, 0
  %828 = vrot.lane.b32.xlu0 %v824, 109
  %v829 = vpop.permute.xlu0 %828
  %830 = vrot.lane.b32.xlu0 %v825, 109
  %v831 = vpop.permute.xlu0 %830
  %832 = vrot.lane.b32.xlu0 %v826, 109
  %v833 = vpop.permute.xlu0 %832
  %834 = vrot.lane.b32.xlu0 %v827, 109
  %v835 = vpop.permute.xlu0 %834
  %840 = vst.msk [vmem:[#allocation5 + $0x1] sm:$0x1] %vm809, %v829
  %841 = vst.msk [vmem:[#allocation5 + $0x11] sm:$0x1] %vm809, %v831
  %842 = vst.msk [vmem:[#allocation5 + $0x21] sm:$0x1] %vm809, %v833
  %843 = vst.msk [vmem:[#allocation5 + $0x31] sm:$0x1] %vm809, %v835
  %v844 = vld [vmem:[#allocation4] sm:$0xf]
  %v846 = vrot.slane %v844, 3
  %v847 = vsel %vm782, %v844, %v846
  %v848 = vsel %vm784, %v844, %v846
  %v849 = vrot.slane %v848, 1
  %v850 = vsel %vm787, %v844, %v846
  %v851 = vrot.slane %v850, 2
  %v852 = vsel %vm790, %v844, %v846
  %v853 = vrot.slane %v852, 3
  %v854 = vperm.slane %v847, 0
  %v855 = vperm.slane %v849, 0
  %v856 = vperm.slane %v851, 0
  %v857 = vperm.slane %v853, 0
  %858 = vrot.lane.b32.xlu0 %v854, 91
  %v859 = vpop.permute.xlu0 %858
  %860 = vrot.lane.b32.xlu0 %v855, 91
  %v861 = vpop.permute.xlu0 %860
  %862 = vrot.lane.b32.xlu0 %v856, 91
  %v863 = vpop.permute.xlu0 %862
  %864 = vrot.lane.b32.xlu0 %v857, 91
  %v865 = vpop.permute.xlu0 %864
  %870 = vst.msk [vmem:[#allocation5 + $0x2] sm:$0x1] %vm809, %v859
  %871 = vst.msk [vmem:[#allocation5 + $0x12] sm:$0x1] %vm809, %v861
  %872 = vst.msk [vmem:[#allocation5 + $0x22] sm:$0x1] %vm809, %v863
  %873 = vst.msk [vmem:[#allocation5 + $0x32] sm:$0x1] %vm809, %v865
  %v874 = vld [vmem:[#allocation4] sm:$0xf]
  %v876 = vrot.slane %v874, 3
  %v877 = vsel %vm782, %v874, %v876
  %v878 = vsel %vm784, %v874, %v876
  %v879 = vrot.slane %v878, 1
  %v880 = vsel %vm787, %v874, %v876
  %v881 = vrot.slane %v880, 2
  %v882 = vsel %vm790, %v874, %v876
  %v883 = vrot.slane %v882, 3
  %v884 = vperm.slane %v877, 0
  %v885 = vperm.slane %v879, 0
  %v886 = vperm.slane %v881, 0
  %v887 = vperm.slane %v883, 0
  %888 = vrot.lane.b32.xlu0 %v884, 73
  %v889 = vpop.permute.xlu0 %888
  %890 = vrot.lane.b32.xlu0 %v885, 73
  %v891 = vpop.permute.xlu0 %890
  %892 = vrot.lane.b32.xlu0 %v886, 73
  %v893 = vpop.permute.xlu0 %892
  %894 = vrot.lane.b32.xlu0 %v887, 73
  %v895 = vpop.permute.xlu0 %894
  %900 = vst.msk [vmem:[#allocation5 + $0x3] sm:$0x1] %vm809, %v889
  %901 = vst.msk [vmem:[#allocation5 + $0x13] sm:$0x1] %vm809, %v891
  %902 = vst.msk [vmem:[#allocation5 + $0x23] sm:$0x1] %vm809, %v893
  %903 = vst.msk [vmem:[#allocation5 + $0x33] sm:$0x1] %vm809, %v895
  %v904 = vld [vmem:[#allocation4] sm:$0xf]
  %v906 = vrot.slane %v904, 3
  %v907 = vsel %vm782, %v904, %v906
  %v908 = vsel %vm784, %v904, %v906
  %v909 = vrot.slane %v908, 1
  %v910 = vsel %vm787, %v904, %v906
  %v911 = vrot.slane %v910, 2
  %v912 = vsel %vm790, %v904, %v906
  %v913 = vrot.slane %v912, 3
  %v914 = vperm.slane %v907, 0
  %v915 = vperm.slane %v909, 0
  %v916 = vperm.slane %v911, 0
  %v917 = vperm.slane %v913, 0
  %918 = vrot.lane.b32.xlu0 %v914, 55
  %v919 = vpop.permute.xlu0 %918
  %920 = vrot.lane.b32.xlu0 %v915, 55
  %v921 = vpop.permute.xlu0 %920
  %922 = vrot.lane.b32.xlu0 %v916, 55
  %v923 = vpop.permute.xlu0 %922
  %924 = vrot.lane.b32.xlu0 %v917, 55
  %v925 = vpop.permute.xlu0 %924
  %930 = vst.msk [vmem:[#allocation5 + $0x4] sm:$0x1] %vm809, %v919
  %931 = vst.msk [vmem:[#allocation5 + $0x14] sm:$0x1] %vm809, %v921
  %932 = vst.msk [vmem:[#allocation5 + $0x24] sm:$0x1] %vm809, %v923
  %933 = vst.msk [vmem:[#allocation5 + $0x34] sm:$0x1] %vm809, %v925
  %v934 = vld [vmem:[#allocation4] sm:$0xf]
  %v936 = vrot.slane %v934, 3
  %v937 = vsel %vm782, %v934, %v936
  %v938 = vsel %vm784, %v934, %v936
  %v939 = vrot.slane %v938, 1
  %v940 = vsel %vm787, %v934, %v936
  %v941 = vrot.slane %v940, 2
  %v942 = vsel %vm790, %v934, %v936
  %v943 = vrot.slane %v942, 3
  %v944 = vperm.slane %v937, 0
  %v945 = vperm.slane %v939, 0
  %v946 = vperm.slane %v941, 0
  %v947 = vperm.slane %v943, 0
  %948 = vrot.lane.b32.xlu0 %v944, 37
  %v949 = vpop.permute.xlu0 %948
  %950 = vrot.lane.b32.xlu0 %v945, 37
  %v951 = vpop.permute.xlu0 %950
  %952 = vrot.lane.b32.xlu0 %v946, 37
  %v953 = vpop.permute.xlu0 %952
  %954 = vrot.lane.b32.xlu0 %v947, 37
  %v955 = vpop.permute.xlu0 %954
  %960 = vst.msk [vmem:[#allocation5 + $0x5] sm:$0x1] %vm809, %v949
  %961 = vst.msk [vmem:[#allocation5 + $0x15] sm:$0x1] %vm809, %v951
  %962 = vst.msk [vmem:[#allocation5 + $0x25] sm:$0x1] %vm809, %v953
  %963 = vst.msk [vmem:[#allocation5 + $0x35] sm:$0x1] %vm809, %v955
  %v964 = vld [vmem:[#allocation4] sm:$0xf]
  %v966 = vrot.slane %v964, 3
  %v967 = vsel %vm782, %v964, %v966
  %v968 = vsel %vm784, %v964, %v966
  %v969 = vrot.slane %v968, 1
  %v970 = vsel %vm787, %v964, %v966
  %v971 = vrot.slane %v970, 2
  %v972 = vsel %vm790, %v964, %v966
  %v973 = vrot.slane %v972, 3
  %v974 = vperm.slane %v967, 0
  %v975 = vperm.slane %v969, 0
  %v976 = vperm.slane %v971, 0
  %v977 = vperm.slane %v973, 0
  %978 = vrot.lane.b32.xlu0 %v974, 19
  %v979 = vpop.permute.xlu0 %978
  %980 = vrot.lane.b32.xlu0 %v975, 19
  %v981 = vpop.permute.xlu0 %980
  %982 = vrot.lane.b32.xlu0 %v976, 19
  %v983 = vpop.permute.xlu0 %982
  %984 = vrot.lane.b32.xlu0 %v977, 19
  %v985 = vpop.permute.xlu0 %984
  %990 = vst.msk [vmem:[#allocation5 + $0x6] sm:$0x1] %vm809, %v979
  %991 = vst.msk [vmem:[#allocation5 + $0x16] sm:$0x1] %vm809, %v981
  %992 = vst.msk [vmem:[#allocation5 + $0x26] sm:$0x1] %vm809, %v983
  %993 = vst.msk [vmem:[#allocation5 + $0x36] sm:$0x1] %vm809, %v985
  %v994 = vld [vmem:[#allocation4] sm:$0xff]
  %v996 = vrot.slane %v994, 3
  %v997 = vsel %vm782, %v994, %v996
  %v998 = vsel %vm784, %v994, %v996
  %v999 = vrot.slane %v998, 1
  %v1000 = vsel %vm787, %v994, %v996
  %v1001 = vrot.slane %v1000, 2
  %v1002 = vsel %vm790, %v994, %v996
  %v1003 = vrot.slane %v1002, 3
  %v1004 = vperm.slane %v997, 0
  %v1005 = vperm.slane %v997, 1
  %v1006 = vperm.slane %v999, 0
  %v1007 = vperm.slane %v999, 1
  %v1008 = vperm.slane %v1001, 0
  %v1009 = vperm.slane %v1001, 1
  %v1010 = vperm.slane %v1003, 0
  %v1011 = vperm.slane %v1003, 1
  %1012 = vrot.lane.b32.xlu0 %v1004, 1
  %v1013 = vpop.permute.xlu0 %1012
  %1014 = vrot.lane.b32.xlu0 %v1005, 1
  %v1015 = vpop.permute.xlu0 %1014
  %1016 = vrot.lane.b32.xlu0 %v1006, 1
  %v1017 = vpop.permute.xlu0 %1016
  %1018 = vrot.lane.b32.xlu0 %v1007, 1
  %v1019 = vpop.permute.xlu0 %1018
  %1020 = vrot.lane.b32.xlu0 %v1008, 1
  %v1021 = vpop.permute.xlu0 %1020
  %1022 = vrot.lane.b32.xlu0 %v1009, 1
  %v1023 = vpop.permute.xlu0 %1022
  %1024 = vrot.lane.b32.xlu0 %v1010, 1
  %v1025 = vpop.permute.xlu0 %1024
  %1026 = vrot.lane.b32.xlu0 %v1011, 1
  %v1027 = vpop.permute.xlu0 %1026
  %vm1028 = vcmask 7168
  %v1029 = vsel %vm1028, %v1013, %v1015
  %v1030 = vsel %vm1028, %v1017, %v1019
  %v1031 = vsel %vm1028, %v1021, %v1023
  %v1032 = vsel %vm1028, %v1025, %v1027
  %1037 = vst.msk [vmem:[#allocation5 + $0x7] sm:$0x1] %vm809, %v1029
  %1038 = vst.msk [vmem:[#allocation5 + $0x17] sm:$0x1] %vm809, %v1030
  %1039 = vst.msk [vmem:[#allocation5 + $0x27] sm:$0x1] %vm809, %v1031
  %1040 = vst.msk [vmem:[#allocation5 + $0x37] sm:$0x1] %vm809, %v1032
  %v1041 = vld [vmem:[#allocation4 + $0x4] sm:$0xf]
  %v1043 = vrot.slane %v1041, 3
  %v1044 = vsel %vm782, %v1041, %v1043
  %v1045 = vsel %vm784, %v1041, %v1043
  %v1046 = vrot.slane %v1045, 1
  %v1047 = vsel %vm787, %v1041, %v1043
  %v1048 = vrot.slane %v1047, 2
  %v1049 = vsel %vm790, %v1041, %v1043
  %v1050 = vrot.slane %v1049, 3
  %v1051 = vperm.slane %v1044, 0
  %v1052 = vperm.slane %v1046, 0
  %v1053 = vperm.slane %v1048, 0
  %v1054 = vperm.slane %v1050, 0
  %1055 = vrot.lane.b32.xlu0 %v1051, 111
  %v1056 = vpop.permute.xlu0 %1055
  %1057 = vrot.lane.b32.xlu0 %v1052, 111
  %v1058 = vpop.permute.xlu0 %1057
  %1059 = vrot.lane.b32.xlu0 %v1053, 111
  %v1060 = vpop.permute.xlu0 %1059
  %1061 = vrot.lane.b32.xlu0 %v1054, 111
  %v1062 = vpop.permute.xlu0 %1061
  %1067 = vst.msk [vmem:[#allocation5 + $0x8] sm:$0x1] %vm809, %v1056
  %1068 = vst.msk [vmem:[#allocation5 + $0x18] sm:$0x1] %vm809, %v1058
  %1069 = vst.msk [vmem:[#allocation5 + $0x28] sm:$0x1] %vm809, %v1060
  %1070 = vst.msk [vmem:[#allocation5 + $0x38] sm:$0x1] %vm809, %v1062
  %v1071 = vld [vmem:[#allocation4 + $0x4] sm:$0xf]
  %v1073 = vrot.slane %v1071, 3
  %v1074 = vsel %vm782, %v1071, %v1073
  %v1075 = vsel %vm784, %v1071, %v1073
  %v1076 = vrot.slane %v1075, 1
  %v1077 = vsel %vm787, %v1071, %v1073
  %v1078 = vrot.slane %v1077, 2
  %v1079 = vsel %vm790, %v1071, %v1073
  %v1080 = vrot.slane %v1079, 3
  %v1081 = vperm.slane %v1074, 0
  %v1082 = vperm.slane %v1076, 0
  %v1083 = vperm.slane %v1078, 0
  %v1084 = vperm.slane %v1080, 0
  %1085 = vrot.lane.b32.xlu0 %v1081, 93
  %v1086 = vpop.permute.xlu0 %1085
  %1087 = vrot.lane.b32.xlu0 %v1082, 93
  %v1088 = vpop.permute.xlu0 %1087
  %1089 = vrot.lane.b32.xlu0 %v1083, 93
  %v1090 = vpop.permute.xlu0 %1089
  %1091 = vrot.lane.b32.xlu0 %v1084, 93
  %v1092 = vpop.permute.xlu0 %1091
  %1097 = vst.msk [vmem:[#allocation5 + $0x9] sm:$0x1] %vm809, %v1086
  %1098 = vst.msk [vmem:[#allocation5 + $0x19] sm:$0x1] %vm809, %v1088
  %1099 = vst.msk [vmem:[#allocation5 + $0x29] sm:$0x1] %vm809, %v1090
  %1100 = vst.msk [vmem:[#allocation5 + $0x39] sm:$0x1] %vm809, %v1092
  %v1101 = vld [vmem:[#allocation4 + $0x4] sm:$0xf]
  %v1103 = vrot.slane %v1101, 3
  %v1104 = vsel %vm782, %v1101, %v1103
  %v1105 = vsel %vm784, %v1101, %v1103
  %v1106 = vrot.slane %v1105, 1
  %v1107 = vsel %vm787, %v1101, %v1103
  %v1108 = vrot.slane %v1107, 2
  %v1109 = vsel %vm790, %v1101, %v1103
  %v1110 = vrot.slane %v1109, 3
  %v1111 = vperm.slane %v1104, 0
  %v1112 = vperm.slane %v1106, 0
  %v1113 = vperm.slane %v1108, 0
  %v1114 = vperm.slane %v1110, 0
  %1115 = vrot.lane.b32.xlu0 %v1111, 75
  %v1116 = vpop.permute.xlu0 %1115
  %1117 = vrot.lane.b32.xlu0 %v1112, 75
  %v1118 = vpop.permute.xlu0 %1117
  %1119 = vrot.lane.b32.xlu0 %v1113, 75
  %v1120 = vpop.permute.xlu0 %1119
  %1121 = vrot.lane.b32.xlu0 %v1114, 75
  %v1122 = vpop.permute.xlu0 %1121
  %1127 = vst.msk [vmem:[#allocation5 + $0xa] sm:$0x1] %vm809, %v1116
  %1128 = vst.msk [vmem:[#allocation5 + $0x1a] sm:$0x1] %vm809, %v1118
  %1129 = vst.msk [vmem:[#allocation5 + $0x2a] sm:$0x1] %vm809, %v1120
  %1130 = vst.msk [vmem:[#allocation5 + $0x3a] sm:$0x1] %vm809, %v1122
  %v1131 = vld [vmem:[#allocation4 + $0x4] sm:$0xf]
  %v1133 = vrot.slane %v1131, 3
  %v1134 = vsel %vm782, %v1131, %v1133
  %v1135 = vsel %vm784, %v1131, %v1133
  %v1136 = vrot.slane %v1135, 1
  %v1137 = vsel %vm787, %v1131, %v1133
  %v1138 = vrot.slane %v1137, 2
  %v1139 = vsel %vm790, %v1131, %v1133
  %v1140 = vrot.slane %v1139, 3
  %v1141 = vperm.slane %v1134, 0
  %v1142 = vperm.slane %v1136, 0
  %v1143 = vperm.slane %v1138, 0
  %v1144 = vperm.slane %v1140, 0
  %1145 = vrot.lane.b32.xlu0 %v1141, 57
  %v1146 = vpop.permute.xlu0 %1145
  %1147 = vrot.lane.b32.xlu0 %v1142, 57
  %v1148 = vpop.permute.xlu0 %1147
  %1149 = vrot.lane.b32.xlu0 %v1143, 57
  %v1150 = vpop.permute.xlu0 %1149
  %1151 = vrot.lane.b32.xlu0 %v1144, 57
  %v1152 = vpop.permute.xlu0 %1151
  %1157 = vst.msk [vmem:[#allocation5 + $0xb] sm:$0x1] %vm809, %v1146
  %1158 = vst.msk [vmem:[#allocation5 + $0x1b] sm:$0x1] %vm809, %v1148
  %1159 = vst.msk [vmem:[#allocation5 + $0x2b] sm:$0x1] %vm809, %v1150
  %1160 = vst.msk [vmem:[#allocation5 + $0x3b] sm:$0x1] %vm809, %v1152
  %v1161 = vld [vmem:[#allocation4 + $0x4] sm:$0xf]
  %v1163 = vrot.slane %v1161, 3
  %v1164 = vsel %vm782, %v1161, %v1163
  %v1165 = vsel %vm784, %v1161, %v1163
  %v1166 = vrot.slane %v1165, 1
  %v1167 = vsel %vm787, %v1161, %v1163
  %v1168 = vrot.slane %v1167, 2
  %v1169 = vsel %vm790, %v1161, %v1163
  %v1170 = vrot.slane %v1169, 3
  %v1171 = vperm.slane %v1164, 0
  %v1172 = vperm.slane %v1166, 0
  %v1173 = vperm.slane %v1168, 0
  %v1174 = vperm.slane %v1170, 0
  %1175 = vrot.lane.b32.xlu0 %v1171, 39
  %v1176 = vpop.permute.xlu0 %1175
  %1177 = vrot.lane.b32.xlu0 %v1172, 39
  %v1178 = vpop.permute.xlu0 %1177
  %1179 = vrot.lane.b32.xlu0 %v1173, 39
  %v1180 = vpop.permute.xlu0 %1179
  %1181 = vrot.lane.b32.xlu0 %v1174, 39
  %v1182 = vpop.permute.xlu0 %1181
  %1187 = vst.msk [vmem:[#allocation5 + $0xc] sm:$0x1] %vm809, %v1176
  %1188 = vst.msk [vmem:[#allocation5 + $0x1c] sm:$0x1] %vm809, %v1178
  %1189 = vst.msk [vmem:[#allocation5 + $0x2c] sm:$0x1] %vm809, %v1180
  %1190 = vst.msk [vmem:[#allocation5 + $0x3c] sm:$0x1] %vm809, %v1182
  %v1191 = vld [vmem:[#allocation4 + $0x4] sm:$0xf]
  %v1193 = vrot.slane %v1191, 3
  %v1194 = vsel %vm782, %v1191, %v1193
  %v1195 = vsel %vm784, %v1191, %v1193
  %v1196 = vrot.slane %v1195, 1
  %v1197 = vsel %vm787, %v1191, %v1193
  %v1198 = vrot.slane %v1197, 2
  %v1199 = vsel %vm790, %v1191, %v1193
  %v1200 = vrot.slane %v1199, 3
  %v1201 = vperm.slane %v1194, 0
  %v1202 = vperm.slane %v1196, 0
  %v1203 = vperm.slane %v1198, 0
  %v1204 = vperm.slane %v1200, 0
  %1205 = vrot.lane.b32.xlu0 %v1201, 21
  %v1206 = vpop.permute.xlu0 %1205
  %1207 = vrot.lane.b32.xlu0 %v1202, 21
  %v1208 = vpop.permute.xlu0 %1207
  %1209 = vrot.lane.b32.xlu0 %v1203, 21
  %v1210 = vpop.permute.xlu0 %1209
  %1211 = vrot.lane.b32.xlu0 %v1204, 21
  %v1212 = vpop.permute.xlu0 %1211
  %1217 = vst.msk [vmem:[#allocation5 + $0xd] sm:$0x1] %vm809, %v1206
  %1218 = vst.msk [vmem:[#allocation5 + $0x1d] sm:$0x1] %vm809, %v1208
  %1219 = vst.msk [vmem:[#allocation5 + $0x2d] sm:$0x1] %vm809, %v1210
  %1220 = vst.msk [vmem:[#allocation5 + $0x3d] sm:$0x1] %vm809, %v1212
  %v1221 = vld [vmem:[#allocation4 + $0x4] sm:$0xff]
  %v1223 = vrot.slane %v1221, 3
  %v1224 = vsel %vm782, %v1221, %v1223
  %v1225 = vsel %vm784, %v1221, %v1223
  %v1226 = vrot.slane %v1225, 1
  %v1227 = vsel %vm787, %v1221, %v1223
  %v1228 = vrot.slane %v1227, 2
  %v1229 = vsel %vm790, %v1221, %v1223
  %v1230 = vrot.slane %v1229, 3
  %v1231 = vperm.slane %v1224, 0
  %v1232 = vperm.slane %v1224, 1
  %v1233 = vperm.slane %v1226, 0
  %v1234 = vperm.slane %v1226, 1
  %v1235 = vperm.slane %v1228, 0
  %v1236 = vperm.slane %v1228, 1
  %v1237 = vperm.slane %v1230, 0
  %v1238 = vperm.slane %v1230, 1
  %1239 = vrot.lane.b32.xlu0 %v1231, 3
  %v1240 = vpop.permute.xlu0 %1239
  %1241 = vrot.lane.b32.xlu0 %v1232, 3
  %v1242 = vpop.permute.xlu0 %1241
  %1243 = vrot.lane.b32.xlu0 %v1233, 3
  %v1244 = vpop.permute.xlu0 %1243
  %1245 = vrot.lane.b32.xlu0 %v1234, 3
  %v1246 = vpop.permute.xlu0 %1245
  %1247 = vrot.lane.b32.xlu0 %v1235, 3
  %v1248 = vpop.permute.xlu0 %1247
  %1249 = vrot.lane.b32.xlu0 %v1236, 3
  %v1250 = vpop.permute.xlu0 %1249
  %1251 = vrot.lane.b32.xlu0 %v1237, 3
  %v1252 = vpop.permute.xlu0 %1251
  %1253 = vrot.lane.b32.xlu0 %v1238, 3
  %v1254 = vpop.permute.xlu0 %1253
  %vm1255 = vcmask 23552
  %v1256 = vsel %vm1255, %v1240, %v1242
  %v1257 = vsel %vm1255, %v1244, %v1246
  %v1258 = vsel %vm1255, %v1248, %v1250
  %v1259 = vsel %vm1255, %v1252, %v1254
  %1264 = vst.msk [vmem:[#allocation5 + $0xe] sm:$0x1] %vm809, %v1256
  %1265 = vst.msk [vmem:[#allocation5 + $0x1e] sm:$0x1] %vm809, %v1257
  %1266 = vst.msk [vmem:[#allocation5 + $0x2e] sm:$0x1] %vm809, %v1258
  %1267 = vst.msk [vmem:[#allocation5 + $0x3e] sm:$0x1] %vm809, %v1259
  %v1268 = vld [vmem:[#allocation4 + $0x8] sm:$0xf]
  %v1270 = vrot.slane %v1268, 3
  %v1271 = vsel %vm782, %v1268, %v1270
  %v1272 = vsel %vm784, %v1268, %v1270
  %v1273 = vrot.slane %v1272, 1
  %v1274 = vsel %vm787, %v1268, %v1270
  %v1275 = vrot.slane %v1274, 2
  %v1276 = vsel %vm790, %v1268, %v1270
  %v1277 = vrot.slane %v1276, 3
  %v1278 = vperm.slane %v1271, 0
  %v1279 = vperm.slane %v1273, 0
  %v1280 = vperm.slane %v1275, 0
  %v1281 = vperm.slane %v1277, 0
  %1282 = vrot.lane.b32.xlu0 %v1278, 113
  %v1283 = vpop.permute.xlu0 %1282
  %1284 = vrot.lane.b32.xlu0 %v1279, 113
  %v1285 = vpop.permute.xlu0 %1284
  %1286 = vrot.lane.b32.xlu0 %v1280, 113
  %v1287 = vpop.permute.xlu0 %1286
  %1288 = vrot.lane.b32.xlu0 %v1281, 113
  %v1289 = vpop.permute.xlu0 %1288
  %1294 = vst.msk [vmem:[#allocation5 + $0xf] sm:$0x1] %vm809, %v1283
  %1295 = vst.msk [vmem:[#allocation5 + $0x1f] sm:$0x1] %vm809, %v1285
  %1296 = vst.msk [vmem:[#allocation5 + $0x2f] sm:$0x1] %vm809, %v1287
  %1297 = vst.msk [vmem:[#allocation5 + $0x3f] sm:$0x1] %vm809, %v1289
  %v1298 = vld [vmem:[#allocation5] sm:$0xff]
  %v1299 = vld [vmem:[#allocation5 + $0x8] sm:$0xff]
  %s1300 = scalar_lea.vmem [#allocation5], 16
  %v1301 = vld [vmem:[%s1300] sm:$0xff]
  %v1302 = vld [vmem:[%s1300 + $0x8] sm:$0xff]
  %s1303 = scalar_lea.vmem [#allocation5], 32
  %v1304 = vld [vmem:[%s1303] sm:$0xff]
  %v1305 = vld [vmem:[%s1303 + $0x8] sm:$0xff]
  %s1306 = scalar_lea.vmem [#allocation5], 48
  %v1307 = vld [vmem:[%s1306] sm:$0xff]
  %v1308 = vld [vmem:[%s1306 + $0x8] sm:$0xff]
  %v1310 = vsel %vm113, %v1298, 0
  %v1313 = vsel %vm113, %v1299, 0
  %1315 = vmatpush.msra.mxu0 0.0
  %1316 = vmatpush.msra.mxu0 0.0
  %1317 = vmatpush.msra.mxu0 0.0
  %1318 = vmatpush.msra.mxu0 0.0
  %1319 = vmatpush.msra.mxu0 0.0
  %1320 = vmatpush.msra.mxu0 0.0
  %1321 = vmatpush.msra.mxu0 0.0
  %1322 = vmatpush.msra.mxu0 0.0
  %1323 = vmatpush.msra.mxu0 0.0
  %1324 = vmatpush.msra.mxu0 0.0
  %1325 = vmatpush.msra.mxu0 0.0
  %1326 = vmatpush.msra.mxu0 0.0
  %1327 = vmatpush.msra.mxu0 0.0
  %1328 = vmatpush.msra.mxu0 0.0
  %1329 = vmatpush.msra.mxu0 %v1302
  %1330 = vmatpush.msra.mxu0 %v1301
  %1331 = vmatmul.f32.gmra.mxu0 %v1310
  %v1332 = vpop.f32.mrf.mxu0
  %v1333 = vadd.f32 0.0, %v1332
  %1334 = vmatmul.f32.gmra.mxu0 %v1313
  %v1335 = vpop.f32.mrf.mxu0
  %v1336 = vadd.f32 0.0, %v1335
  %1337 = vdwg.mxu0
  %v1338 = vxor.u32 %v1333, 2147483648
  %v1339 = vxor.u32 %v1336, 2147483648
  %v1340 = vmul.f32 %v1338, 1.442695
  %v1341 = vpow.pop %v1340
  %v1342 = vmul.f32 %v1339, 1.442695
  %v1343 = vpow.pop %v1342
  %v1344 = vadd.f32 %v1341, 1.0
  %v1345 = vadd.f32 %v1343, 1.0
  %v1346 = vrcp.pop %v1344
  %v1347 = vmul.f32 %v1344, %v1346
  %v1348 = vsub.f32 1.0, %v1347
  %v1349 = vmul.f32 %v1346, %v1348
  %v1350 = vadd.f32 %v1346, %v1349
  %vm1351 = vweird.f32 %v1344
  %vm1352 = vweird.f32 %v1346
  %vm1353 = vmor %vm1351, %vm1352
  %v1354 = vsel %vm1353, %v1346, %v1350
  %v1355 = vand.u32 2147483647, %v1344
  %vm1356 = vcmp.eq.f32.partialorder %v1355, 8.507059e+37
  %v1357 = vand.u32 %v1344, 2147483648
  %v1358 = vor.u32 1.1754944e-38, %v1357
  %v1359 = vsel %vm1356, %v1358, %v1354
  %v1360 = vmul.f32 1.0, %v1359
  %v1361 = vrcp.pop %v1345
  %v1362 = vmul.f32 %v1345, %v1361
  %v1363 = vsub.f32 1.0, %v1362
  %v1364 = vmul.f32 %v1361, %v1363
  %v1365 = vadd.f32 %v1361, %v1364
  %vm1366 = vweird.f32 %v1345
  %vm1367 = vweird.f32 %v1361
  %vm1368 = vmor %vm1366, %vm1367
  %v1369 = vsel %vm1368, %v1361, %v1365
  %v1370 = vand.u32 2147483647, %v1345
  %vm1371 = vcmp.eq.f32.partialorder %v1370, 8.507059e+37
  %v1372 = vand.u32 %v1345, 2147483648
  %v1373 = vor.u32 1.1754944e-38, %v1372
  %v1374 = vsel %vm1371, %v1373, %v1369
  %v1375 = vmul.f32 1.0, %v1374
  %v1377 = vsel %vm113, %v1304, 0
  %v1380 = vsel %vm113, %v1305, 0
  %1382 = vmatpush.msra.mxu0 0.0
  %1383 = vmatpush.msra.mxu0 0.0
  %1384 = vmatpush.msra.mxu0 0.0
  %1385 = vmatpush.msra.mxu0 0.0
  %1386 = vmatpush.msra.mxu0 0.0
  %1387 = vmatpush.msra.mxu0 0.0
  %1388 = vmatpush.msra.mxu0 0.0
  %1389 = vmatpush.msra.mxu0 0.0
  %1390 = vmatpush.msra.mxu0 0.0
  %1391 = vmatpush.msra.mxu0 0.0
  %1392 = vmatpush.msra.mxu0 0.0
  %1393 = vmatpush.msra.mxu0 0.0
  %1394 = vmatpush.msra.mxu0 0.0
  %1395 = vmatpush.msra.mxu0 0.0
  %1396 = vmatpush.msra.mxu0 %v1308
  %1397 = vmatpush.msra.mxu0 %v1307
  %1398 = vmatmul.f32.gmra.mxu0 %v1377
  %v1399 = vpop.f32.mrf.mxu0
  %v1400 = vadd.f32 0.0, %v1399
  %1401 = vmatmul.f32.gmra.mxu0 %v1380
  %v1402 = vpop.f32.mrf.mxu0
  %v1403 = vadd.f32 0.0, %v1402
  %1404 = vdwg.mxu0
  %v1405 = vxor.u32 %v1400, 2147483648
  %v1406 = vxor.u32 %v1403, 2147483648
  %v1407 = vmul.f32 %v1405, 1.442695
  %v1408 = vpow.pop %v1407
  %v1409 = vmul.f32 %v1406, 1.442695
  %v1410 = vpow.pop %v1409
  %v1411 = vadd.f32 %v1408, 1.0
  %v1412 = vadd.f32 %v1410, 1.0
  %v1413 = vrcp.pop %v1411
  %v1414 = vmul.f32 %v1411, %v1413
  %v1415 = vsub.f32 1.0, %v1414
  %v1416 = vmul.f32 %v1413, %v1415
  %v1417 = vadd.f32 %v1413, %v1416
  %vm1418 = vweird.f32 %v1411
  %vm1419 = vweird.f32 %v1413
  %vm1420 = vmor %vm1418, %vm1419
  %v1421 = vsel %vm1420, %v1413, %v1417
  %v1422 = vand.u32 2147483647, %v1411
  %vm1423 = vcmp.eq.f32.partialorder %v1422, 8.507059e+37
  %v1424 = vand.u32 %v1411, 2147483648
  %v1425 = vor.u32 1.1754944e-38, %v1424
  %v1426 = vsel %vm1423, %v1425, %v1421
  %v1427 = vmul.f32 1.0, %v1426
  %v1428 = vrcp.pop %v1412
  %v1429 = vmul.f32 %v1412, %v1428
  %v1430 = vsub.f32 1.0, %v1429
  %v1431 = vmul.f32 %v1428, %v1430
  %v1432 = vadd.f32 %v1428, %v1431
  %vm1433 = vweird.f32 %v1412
  %vm1434 = vweird.f32 %v1428
  %vm1435 = vmor %vm1433, %vm1434
  %v1436 = vsel %vm1435, %v1428, %v1432
  %v1437 = vand.u32 2147483647, %v1412
  %vm1438 = vcmp.eq.f32.partialorder %v1437, 8.507059e+37
  %v1439 = vand.u32 %v1412, 2147483648
  %v1440 = vor.u32 1.1754944e-38, %v1439
  %v1441 = vsel %vm1438, %v1440, %v1436
  %v1442 = vmul.f32 1.0, %v1441
  %1443 = vst.msk [vmem:[#allocation6] sm:$0x1] %vm809, %v1360
  %1444 = vst.msk [vmem:[#allocation6 + $0x1] sm:$0x1] %vm809, %v1427
  %v1446 = vrot.slane %v1360, 7
  %v1447 = vrot.slane %v1446, 2
  %1448 = vrot.lane.b32.xlu0 %v1447, 16
  %v1449 = vpop.permute.xlu0 %1448
  %vm1451 = vcmask 254080
  %1452 = vst.msk [vmem:[#allocation6] sm:$0x1] %vm1451, %v1449
  %v1454 = vrot.slane %v1427, 7
  %v1455 = vrot.slane %v1454, 2
  %1456 = vrot.lane.b32.xlu0 %v1455, 16
  %v1457 = vpop.permute.xlu0 %1456
  %1459 = vst.msk [vmem:[#allocation6 + $0x1] sm:$0x1] %vm1451, %v1457
  %1460 = vst.sshfl [vmem:[#allocation1] sm:$0xff pattern:$0x73625140] %v1360
  %s1461 = scalar_lea.vmem [#allocation1], 1
  %v1462 = vld [vmem:[%s1461] ss:$4 sm:$0xff]
  %1463 = vrot.lane.b32.xlu0 %v1462, 32
  %v1464 = vpop.permute.xlu0 %1463
  %vm1466 = vcmask 385280
  %1467 = vst.msk [vmem:[#allocation6] sm:$0x1] %vm1466, %v1464
  %1468 = vst.sshfl [vmem:[#allocation1] sm:$0xff pattern:$0x73625140] %v1427
  %s1469 = scalar_lea.vmem [#allocation1], 1
  %v1470 = vld [vmem:[%s1469] ss:$4 sm:$0xff]
  %1471 = vrot.lane.b32.xlu0 %v1470, 32
  %v1472 = vpop.permute.xlu0 %1471
  %1474 = vst.msk [vmem:[#allocation6 + $0x1] sm:$0x1] %vm1466, %v1472
  %1475 = vst.sshfl [vmem:[#allocation1] sm:$0xff pattern:$0x73625140] %v1360
  %s1476 = scalar_lea.vmem [#allocation1], 1
  %v1477 = vld [vmem:[%s1476] ss:$4 sm:$0xff]
  %v1478 = vrot.slane %v1477, 7
  %v1479 = vrot.slane %v1478, 2
  %1480 = vrot.lane.b32.xlu0 %v1479, 48
  %v1481 = vpop.permute.xlu0 %1480
  %vm1483 = vcmask 516480
  %1484 = vst.msk [vmem:[#allocation6] sm:$0x1] %vm1483, %v1481
  %1485 = vst.sshfl [vmem:[#allocation1] sm:$0xff pattern:$0x73625140] %v1427
  %s1486 = scalar_lea.vmem [#allocation1], 1
  %v1487 = vld [vmem:[%s1486] ss:$4 sm:$0xff]
  %v1488 = vrot.slane %v1487, 7
  %v1489 = vrot.slane %v1488, 2
  %1490 = vrot.lane.b32.xlu0 %v1489, 48
  %v1491 = vpop.permute.xlu0 %1490
  %1493 = vst.msk [vmem:[#allocation6 + $0x1] sm:$0x1] %vm1483, %v1491
  %1494 = vst.sshfl [vmem:[#allocation1] sm:$0xff pattern:$0x73625140] %v1360
  %s1495 = scalar_lea.vmem [#allocation1], 2
  %v1496 = vld [vmem:[%s1495] ss:$4 sm:$0xff]
  %1497 = vrot.lane.b32.xlu0 %v1496, 64
  %v1498 = vpop.permute.xlu0 %1497
  %vm1500 = vcmask 647680
  %1501 = vst.msk [vmem:[#allocation6] sm:$0x1] %vm1500, %v1498
  %1502 = vst.sshfl [vmem:[#allocation1] sm:$0xff pattern:$0x73625140] %v1427
  %s1503 = scalar_lea.vmem [#allocation1], 2
  %v1504 = vld [vmem:[%s1503] ss:$4 sm:$0xff]
  %1505 = vrot.lane.b32.xlu0 %v1504, 64
  %v1506 = vpop.permute.xlu0 %1505
  %1508 = vst.msk [vmem:[#allocation6 + $0x1] sm:$0x1] %vm1500, %v1506
  %1509 = vst.sshfl [vmem:[#allocation1] sm:$0xff pattern:$0x73625140] %v1360
  %s1510 = scalar_lea.vmem [#allocation1], 2
  %v1511 = vld [vmem:[%s1510] ss:$4 sm:$0xff]
  %v1512 = vrot.slane %v1511, 7
  %v1513 = vrot.slane %v1512, 2
  %1514 = vrot.lane.b32.xlu0 %v1513, 80
  %v1515 = vpop.permute.xlu0 %1514
  %vm1517 = vcmask 778880
  %1518 = vst.msk [vmem:[#allocation6] sm:$0x1] %vm1517, %v1515
  %1519 = vst.sshfl [vmem:[#allocation1] sm:$0xff pattern:$0x73625140] %v1427
  %s1520 = scalar_lea.vmem [#allocation1], 2
  %v1521 = vld [vmem:[%s1520] ss:$4 sm:$0xff]
  %v1522 = vrot.slane %v1521, 7
  %v1523 = vrot.slane %v1522, 2
  %1524 = vrot.lane.b32.xlu0 %v1523, 80
  %v1525 = vpop.permute.xlu0 %1524
  %1527 = vst.msk [vmem:[#allocation6 + $0x1] sm:$0x1] %vm1517, %v1525
  %1528 = vst.sshfl [vmem:[#allocation1] sm:$0xff pattern:$0x73625140] %v1360
  %s1529 = scalar_lea.vmem [#allocation1], 3
  %v1530 = vld [vmem:[%s1529] ss:$4 sm:$0xff]
  %1531 = vrot.lane.b32.xlu0 %v1530, 96
  %v1532 = vpop.permute.xlu0 %1531
  %vm1534 = vcmask 910080
  %1535 = vst.msk [vmem:[#allocation6] sm:$0x1] %vm1534, %v1532
  %1536 = vst.sshfl [vmem:[#allocation1] sm:$0xff pattern:$0x73625140] %v1427
  %s1537 = scalar_lea.vmem [#allocation1], 3
  %v1538 = vld [vmem:[%s1537] ss:$4 sm:$0xff]
  %1539 = vrot.lane.b32.xlu0 %v1538, 96
  %v1540 = vpop.permute.xlu0 %1539
  %1542 = vst.msk [vmem:[#allocation6 + $0x1] sm:$0x1] %vm1534, %v1540
  %1543 = vst.sshfl [vmem:[#allocation1] sm:$0xff pattern:$0x73625140] %v1360
  %s1544 = scalar_lea.vmem [#allocation1], 3
  %v1545 = vld [vmem:[%s1544] ss:$4 sm:$0xff]
  %v1546 = vrot.slane %v1545, 7
  %v1547 = vrot.slane %v1546, 2
  %1548 = vrot.lane.b32.xlu0 %v1547, 112
  %v1549 = vpop.permute.xlu0 %1548
  %vm1551 = vcmask 1041280
  %1552 = vst.msk [vmem:[#allocation6] sm:$0x1] %vm1551, %v1549
  %1553 = vst.sshfl [vmem:[#allocation1] sm:$0xff pattern:$0x73625140] %v1427
  %s1554 = scalar_lea.vmem [#allocation1], 3
  %v1555 = vld [vmem:[%s1554] ss:$4 sm:$0xff]
  %v1556 = vrot.slane %v1555, 7
  %v1557 = vrot.slane %v1556, 2
  %1558 = vrot.lane.b32.xlu0 %v1557, 112
  %v1559 = vpop.permute.xlu0 %1558
  %1561 = vst.msk [vmem:[#allocation6 + $0x1] sm:$0x1] %vm1551, %v1559
  %1562 = vst.msk [vmem:[#allocation6 + $0x2] sm:$0x1] %vm809, %v1375
  %1563 = vst.msk [vmem:[#allocation6 + $0x3] sm:$0x1] %vm809, %v1442
  %v1565 = vrot.slane %v1375, 7
  %v1566 = vrot.slane %v1565, 2
  %1567 = vrot.lane.b32.xlu0 %v1566, 16
  %v1568 = vpop.permute.xlu0 %1567
  %1570 = vst.msk [vmem:[#allocation6 + $0x2] sm:$0x1] %vm1451, %v1568
  %v1572 = vrot.slane %v1442, 7
  %v1573 = vrot.slane %v1572, 2
  %1574 = vrot.lane.b32.xlu0 %v1573, 16
  %v1575 = vpop.permute.xlu0 %1574
  %1577 = vst.msk [vmem:[#allocation6 + $0x3] sm:$0x1] %vm1451, %v1575
  %1578 = vst.sshfl [vmem:[#allocation1] sm:$0xff pattern:$0x73625140] %v1375
  %s1579 = scalar_lea.vmem [#allocation1], 1
  %v1580 = vld [vmem:[%s1579] ss:$4 sm:$0xff]
  %1581 = vrot.lane.b32.xlu0 %v1580, 32
  %v1582 = vpop.permute.xlu0 %1581
  %1584 = vst.msk [vmem:[#allocation6 + $0x2] sm:$0x1] %vm1466, %v1582
  %1585 = vst.sshfl [vmem:[#allocation1] sm:$0xff pattern:$0x73625140] %v1442
  %s1586 = scalar_lea.vmem [#allocation1], 1
  %v1587 = vld [vmem:[%s1586] ss:$4 sm:$0xff]
  %1588 = vrot.lane.b32.xlu0 %v1587, 32
  %v1589 = vpop.permute.xlu0 %1588
  %1591 = vst.msk [vmem:[#allocation6 + $0x3] sm:$0x1] %vm1466, %v1589
  %1592 = vst.sshfl [vmem:[#allocation1] sm:$0xff pattern:$0x73625140] %v1375
  %s1593 = scalar_lea.vmem [#allocation1], 1
  %v1594 = vld [vmem:[%s1593] ss:$4 sm:$0xff]
  %v1595 = vrot.slane %v1594, 7
  %v1596 = vrot.slane %v1595, 2
  %1597 = vrot.lane.b32.xlu0 %v1596, 48
  %v1598 = vpop.permute.xlu0 %1597
  %1600 = vst.msk [vmem:[#allocation6 + $0x2] sm:$0x1] %vm1483, %v1598
  %1601 = vst.sshfl [vmem:[#allocation1] sm:$0xff pattern:$0x73625140] %v1442
  %s1602 = scalar_lea.vmem [#allocation1], 1
  %v1603 = vld [vmem:[%s1602] ss:$4 sm:$0xff]
  %v1604 = vrot.slane %v1603, 7
  %v1605 = vrot.slane %v1604, 2
  %1606 = vrot.lane.b32.xlu0 %v1605, 48
  %v1607 = vpop.permute.xlu0 %1606
  %1609 = vst.msk [vmem:[#allocation6 + $0x3] sm:$0x1] %vm1483, %v1607
  %1610 = vst.sshfl [vmem:[#allocation1] sm:$0xff pattern:$0x73625140] %v1375
  %s1611 = scalar_lea.vmem [#allocation1], 2
  %v1612 = vld [vmem:[%s1611] ss:$4 sm:$0xff]
  %1613 = vrot.lane.b32.xlu0 %v1612, 64
  %v1614 = vpop.permute.xlu0 %1613
  %1616 = vst.msk [vmem:[#allocation6 + $0x2] sm:$0x1] %vm1500, %v1614
  %1617 = vst.sshfl [vmem:[#allocation1] sm:$0xff pattern:$0x73625140] %v1442
  %s1618 = scalar_lea.vmem [#allocation1], 2
  %v1619 = vld [vmem:[%s1618] ss:$4 sm:$0xff]
  %1620 = vrot.lane.b32.xlu0 %v1619, 64
  %v1621 = vpop.permute.xlu0 %1620
  %1623 = vst.msk [vmem:[#allocation6 + $0x3] sm:$0x1] %vm1500, %v1621
  %1624 = vst.sshfl [vmem:[#allocation1] sm:$0xff pattern:$0x73625140] %v1375
  %s1625 = scalar_lea.vmem [#allocation1], 2
  %v1626 = vld [vmem:[%s1625] ss:$4 sm:$0xff]
  %v1627 = vrot.slane %v1626, 7
  %v1628 = vrot.slane %v1627, 2
  %1629 = vrot.lane.b32.xlu0 %v1628, 80
  %v1630 = vpop.permute.xlu0 %1629
  %1632 = vst.msk [vmem:[#allocation6 + $0x2] sm:$0x1] %vm1517, %v1630
  %1633 = vst.sshfl [vmem:[#allocation1] sm:$0xff pattern:$0x73625140] %v1442
  %s1634 = scalar_lea.vmem [#allocation1], 2
  %v1635 = vld [vmem:[%s1634] ss:$4 sm:$0xff]
  %v1636 = vrot.slane %v1635, 7
  %v1637 = vrot.slane %v1636, 2
  %1638 = vrot.lane.b32.xlu0 %v1637, 80
  %v1639 = vpop.permute.xlu0 %1638
  %1641 = vst.msk [vmem:[#allocation6 + $0x3] sm:$0x1] %vm1517, %v1639
  %1642 = vst.sshfl [vmem:[#allocation1] sm:$0xff pattern:$0x73625140] %v1375
  %s1643 = scalar_lea.vmem [#allocation1], 3
  %v1644 = vld [vmem:[%s1643] ss:$4 sm:$0xff]
  %1645 = vrot.lane.b32.xlu0 %v1644, 96
  %v1646 = vpop.permute.xlu0 %1645
  %1648 = vst.msk [vmem:[#allocation6 + $0x2] sm:$0x1] %vm1534, %v1646
  %1649 = vst.sshfl [vmem:[#allocation1] sm:$0xff pattern:$0x73625140] %v1442
  %s1650 = scalar_lea.vmem [#allocation1], 3
  %v1651 = vld [vmem:[%s1650] ss:$4 sm:$0xff]
  %1652 = vrot.lane.b32.xlu0 %v1651, 96
  %v1653 = vpop.permute.xlu0 %1652
  %1655 = vst.msk [vmem:[#allocation6 + $0x3] sm:$0x1] %vm1534, %v1653
  %1656 = vst.sshfl [vmem:[#allocation1] sm:$0xff pattern:$0x73625140] %v1375
  %s1657 = scalar_lea.vmem [#allocation1], 3
  %v1658 = vld [vmem:[%s1657] ss:$4 sm:$0xff]
  %v1659 = vrot.slane %v1658, 7
  %v1660 = vrot.slane %v1659, 2
  %1661 = vrot.lane.b32.xlu0 %v1660, 112
  %v1662 = vpop.permute.xlu0 %1661
  %1664 = vst.msk [vmem:[#allocation6 + $0x2] sm:$0x1] %vm1551, %v1662
  %1665 = vst.sshfl [vmem:[#allocation1] sm:$0xff pattern:$0x73625140] %v1442
  %s1666 = scalar_lea.vmem [#allocation1], 3
  %v1667 = vld [vmem:[%s1666] ss:$4 sm:$0xff]
  %v1668 = vrot.slane %v1667, 7
  %v1669 = vrot.slane %v1668, 2
  %1670 = vrot.lane.b32.xlu0 %v1669, 112
  %v1671 = vpop.permute.xlu0 %1670
  %1673 = vst.msk [vmem:[#allocation6 + $0x3] sm:$0x1] %vm1551, %v1671
  %v1674 = vld [vmem:[#allocation6] ss:$2 sm:$0x3]
  %v1675 = vld [vmem:[%s0] sm:$0xff]
  %v1676 = vld [vmem:[%s0 + $0x8] sm:$0xff]
  %v1678 = vperm.slane %v1674, 0
  %v1679 = vperm.slane %v1674, 1
  %v1682 = vmul.f32 %v1678, %v1675
  %v1683 = vmul.f32 %v1679, %v1676
  %v1684 = vld [vmem:[%s4] sm:$0xff]
  %1686 = vset.pattern.permute.xlu0 0
  %1687 = vperm.xlu0 %1686, %v1684
  %v1688 = vpop.permute.xlu0 %1687
  %v1690 = vmul.f32 %v1682, %v1688
  %v1691 = vmul.f32 %v1683, %v1688
  %s1692 = scalar_lea.vmem [#allocation6], 1
  %v1693 = vld [vmem:[%s1692] ss:$2 sm:$0x3]
  %v1694 = vld [vmem:[%s1] sm:$0xff]
  %v1695 = vld [vmem:[%s1 + $0x8] sm:$0xff]
  %v1697 = vperm.slane %v1693, 0
  %v1698 = vperm.slane %v1693, 1
  %v1701 = vmul.f32 %v1697, %v1694
  %v1702 = vmul.f32 %v1698, %v1695
  %v1703 = vld [vmem:[%s5] sm:$0xff]
  %1705 = vset.pattern.permute.xlu0 0
  %1706 = vperm.xlu0 %1705, %v1703
  %v1707 = vpop.permute.xlu0 %1706
  %v1709 = vmul.f32 %v1701, %v1707
  %v1710 = vmul.f32 %v1702, %v1707
  %v1711 = vadd.f32 %v1690, %v1709
  %v1712 = vadd.f32 %v1691, %v1710
  %1713 = vst [vmem:[%s6] sm:$0xff] %v1711
  %1714 = vst [vmem:[%s6 + $0x8] sm:$0xff] %v1712
  // Predicated region
  $region26: #{spm_forward.1} parent=0 // pred_check
    _
  $region27: #{spm_forward.1} parent=0 // pred_check_branch
    %1716 = sbr.rel (0) target = $region29
  $region28: #{spm_forward.1} parent=0 // pred_region
    _
  $region29: #{spm_forward.1} parent=0 // pred_fallthru
    _
  // Predicated region
  $region30: #{spm_forward.1} parent=0 // pred_check
    _
  $region31: #{spm_forward.1} parent=0 // pred_check_branch
    %1718 = sbr.rel (0) target = $region33
  $region32: #{spm_forward.1} parent=0 // pred_region
    _
  $region33: #{spm_forward.1} parent=0 // pred_fallthru
    _

</llo_original>
